<compile_context>
chip_gen: v5e
topology: v5e:2x2
jax: 0.10.0
libtpu: 0.0.40
codegen_flags: <defaults>
</compile_context>

<pallas_src>
import functools
import math

import jax
import jax.numpy as jnp
import numpy as np
from jax.experimental import pallas as pl
from jax.experimental.pallas import tpu as pltpu

D_MODEL = 32
N_HEADS = 4
D_FF = 64
D_K = D_MODEL // N_HEADS
LN_EPS = 1e-5                       # torch.nn.LayerNorm default eps
ATT_SCALE = 1.0 / math.sqrt(D_K)


# ---------------- in-kernel helpers (traced inside the Pallas kernel) ----------------

def _layer_norm(x, gamma, beta):
    mu = jnp.mean(x, axis=-1, keepdims=True)
    var = jnp.mean((x - mu) ** 2, axis=-1, keepdims=True)
    return (x - mu) * jax.lax.rsqrt(var + LN_EPS) * gamma + beta


def _softmax_lastdim(s):
    s = s - jnp.max(s, axis=-1, keepdims=True)
    p = jnp.exp(s)
    return p * pl.reciprocal(jnp.sum(p, axis=-1, keepdims=True), approx=True)


def _mha_core(q2, k2, v2, B, Tq, Tk):
    """q2: (B*Tq, D) already scaled by 1/sqrt(d_k); k2/v2: (B*Tk, D)."""
    q3 = q2.reshape(B, Tq, D_MODEL)
    k3 = k2.reshape(B, Tk, D_MODEL)
    v3 = v2.reshape(B, Tk, D_MODEL)
    ctx = []
    for h in range(N_HEADS):          # static unroll; static lane slices
        sl = slice(h * D_K, (h + 1) * D_K)
        s = jnp.einsum("bqd,bkd->bqk", q3[:, :, sl], k3[:, :, sl],
                       preferred_element_type=jnp.float32)
        p = _softmax_lastdim(s)
        ctx.append(jnp.einsum("bqk,bkd->bqd", p, v3[:, :, sl],
                              preferred_element_type=jnp.float32))
    return jnp.concatenate(ctx, axis=-1).reshape(B * Tq, D_MODEL)


# ---------------------------------- Pallas kernel ----------------------------------

def decoder_layer_kernel(
    x_ref, enc_ref,
    w_sqkv_ref, b_sqkv_ref, w_so_ref,          # self-attention (fused QKV)
    w_cqkv_ref, b_cqkv_ref, w_co_ref,          # cross-attention (fused QKV)
    w_ff1_ref, b_ff1_ref, w_ff2_ref,           # feed-forward
    vec_ref,                                   # stacked (1, D) vectors
    o_ref,
    *, B, Tq, Tk,
):
    # TODO(synk): src_mask / tgt_mask support not implemented; reference forward
    #             defaults them to None, which is what this kernel reproduces.
    D = D_MODEL
    x = x_ref[...]       # (B*Tq, D)
    enc = enc_ref[...]   # (B*Tk, D)

    vecs = vec_ref[...]  # (9, D): b_so, b_co, b_ff2, g1, be1, g2, be2, g3, be3
    b_so, b_co, b_ff2 = vecs[0:1, :], vecs[1:2, :], vecs[2:3, :]
    g1, be1 = vecs[3:4, :], vecs[4:5, :]
    g2, be2 = vecs[5:6, :], vecs[6:7, :]
    g3, be3 = vecs[7:8, :], vecs[8:9, :]

    # ---- self-attention: single fused QKV matmul with M = B*Tq rows ----
    qkv = jnp.dot(x, w_sqkv_ref[...],
                  preferred_element_type=jnp.float32) + b_sqkv_ref[...]
    q = qkv[:, :D] * ATT_SCALE
    k = qkv[:, D:2 * D]
    v = qkv[:, 2 * D:]
    ctx = _mha_core(q, k, v, B, Tq, Tq)
    sa = jnp.dot(ctx, w_so_ref[...], preferred_element_type=jnp.float32) + b_so
    x = _layer_norm(x + sa, g1, be1)

    # ---- cross-attention: Q from x, fused KV projection from enc_out ----
    w_cqkv = w_cqkv_ref[...]
    b_cqkv = b_cqkv_ref[...]
    q = (jnp.dot(x, w_cqkv[:, :D], preferred_element_type=jnp.float32)
         + b_cqkv[:, :D]) * ATT_SCALE
    kv = jnp.dot(enc, w_cqkv[:, D:],
                 preferred_element_type=jnp.float32) + b_cqkv[:, D:]
    ctx = _mha_core(q, kv[:, :D], kv[:, D:], B, Tq, Tk)
    ca = jnp.dot(ctx, w_co_ref[...], preferred_element_type=jnp.float32) + b_co
    x = _layer_norm(x + ca, g2, be2)

    # ---- feed-forward ----
    h = jnp.maximum(
        jnp.dot(x, w_ff1_ref[...], preferred_element_type=jnp.float32)
        + b_ff1_ref[...], 0.0)
    ff = jnp.dot(h, w_ff2_ref[...], preferred_element_type=jnp.float32) + b_ff2
    x = _layer_norm(x + ff, g3, be3)

    o_ref[...] = x.astype(o_ref.dtype)


# ------------------------------------- wrapper --------------------------------------

def pack_params(params):
    """Fuse per-projection weights/biases into a few dense arrays (done once)."""
    (swq, sbq, swk, sbk, swv, sbv, swo, sbo,
     cwq, cbq, cwk, cbk, cwv, cbv, cwo, cbo,
     fw1, fb1, fw2, fb2, g1, be1, g2, be2, g3, be3) = params
    w_sqkv = jnp.concatenate([swq, swk, swv], axis=1)   # (D, 3D)
    b_sqkv = jnp.concatenate([sbq, sbk, sbv], axis=1)   # (1, 3D)
    w_cqkv = jnp.concatenate([cwq, cwk, cwv], axis=1)
    b_cqkv = jnp.concatenate([cbq, cbk, cbv], axis=1)
    vecs = jnp.concatenate([sbo, cbo, fb2, g1, be1, g2, be2, g3, be3], axis=0)  # (9, D)
    return (w_sqkv, b_sqkv, swo, w_cqkv, b_cqkv, cwo, fw1, fb1, fw2, vecs)


def decoder_layer(x, enc_out, packed):
    B, Tq, D = x.shape
    _, Tk, _ = enc_out.shape
    assert D == D_MODEL

    # Flatten B*Tq / B*Tk into the matmul M dimension (free reshape in XLA).
    x2 = x.reshape(B * Tq, D)
    enc2 = enc_out.reshape(B * Tk, D)
    operands = (x2, enc2) + tuple(packed)

    # Single grid step: the whole working set fits comfortably in VMEM on
    # v5e/v6e/v7x, so every input is DMA'd exactly once.
    # TODO(synk): for large B on v7x, reintroduce a "parallel" batch grid axis
    #             (multiple of 2) so both TensorCores get work.
    in_specs = [pl.BlockSpec(a.shape, lambda i: (0, 0)) for a in operands]
    out_spec = pl.BlockSpec((B * Tq, D), lambda i: (0, 0))

    kernel = functools.partial(decoder_layer_kernel, B=B, Tq=Tq, Tk=Tk)

    out2 = pl.pallas_call(
        kernel,
        out_shape=jax.ShapeDtypeStruct((B * Tq, D), x.dtype),
        grid_spec=pltpu.PrefetchScalarGridSpec(
            num_scalar_prefetch=0,
            grid=(1,),
            in_specs=in_specs,
            out_specs=out_spec,
        ),
        compiler_params=pltpu.CompilerParams(
            dimension_semantics=("arbitrary",)),
    )(*operands)
    return out2.reshape(B, Tq, D)


# --------------------------- deterministic parameter init ---------------------------

def init_params(key):
    def lin(k, din, dout):
        kw, kb = jax.random.split(k)
        w = jax.random.normal(kw, (din, dout), jnp.float32) * 0.05
        b = jax.random.normal(kb, (1, dout), jnp.float32) * 0.05
        return w, b

    keys = jax.random.split(key, 10)
    params = []
    for i in range(4):                               # self-attention q, k, v, out
        params += list(lin(keys[i], D_MODEL, D_MODEL))
    for i in range(4, 8):                            # cross-attention q, k, v, out
        params += list(lin(keys[i], D_MODEL, D_MODEL))
    params += list(lin(keys[8], D_MODEL, D_FF))      # feed-forward
    params += list(lin(keys[9], D_FF, D_MODEL))
    for _ in range(3):                               # layer norms (gamma=1, beta=0)
        params.append(jnp.ones((1, D_MODEL), jnp.float32))
        params.append(jnp.zeros((1, D_MODEL), jnp.float32))
    return params


# ---------------------------- pure-JAX reference (checker) ---------------------------

def ref_forward(x, enc, params):
    (swq, sbq, swk, sbk, swv, sbv, swo, sbo,
     cwq, cbq, cwk, cbk, cwv, cbv, cwo, cbo,
     fw1, fb1, fw2, fb2, g1, be1, g2, be2, g3, be3) = params

    def mha(xq, xkv, wq, bq, wk, bk, wv, bv, wo, bo):
        B, Tq, D = xq.shape
        Tk = xkv.shape[1]
        q = (xq @ wq + bq).reshape(B, Tq, N_HEADS, D_K).transpose(0, 2, 1, 3)
        k = (xkv @ wk + bk).reshape(B, Tk, N_HEADS, D_K).transpose(0, 2, 1, 3)
        v = (xkv @ wv + bv).reshape(B, Tk, N_HEADS, D_K).transpose(0, 2, 1, 3)
        s = jnp.einsum("bhqd,bhkd->bhqk", q, k) / math.sqrt(D_K)
        a = jax.nn.softmax(s, axis=-1)
        c = jnp.einsum("bhqk,bhkd->bhqd", a, v).transpose(0, 2, 1, 3).reshape(B, Tq, D)
        return c @ wo + bo

    def ln(t, g, b):
        mu = t.mean(-1, keepdims=True)
        var = ((t - mu) ** 2).mean(-1, keepdims=True)
        return (t - mu) / jnp.sqrt(var + LN_EPS) * g + b

    x = ln(x + mha(x, x, swq, sbq, swk, sbk, swv, sbv, swo, sbo), g1, be1)
    x = ln(x + mha(x, enc, cwq, cbq, cwk, cbk, cwv, cbv, cwo, cbo), g2, be2)
    h = jnp.maximum(x @ fw1 + fb1, 0.0)
    x = ln(x + h @ fw2 + fb2, g3, be3)
    return x


if __name__ == "__main__":
    key = jax.random.PRNGKey(0)
    kx, ke, kp = jax.random.split(key, 3)
    B, Tq, Tk = 2, 8, 8
    x = jax.random.normal(kx, (B, Tq, D_MODEL), jnp.float32)
    enc_out = jax.random.normal(ke, (B, Tk, D_MODEL), jnp.float32)
    params = init_params(kp)
    packed = pack_params(params)

    out = decoder_layer(x, enc_out, packed)
    out = jax.block_until_ready(out)

    ref = ref_forward(x, enc_out, params)
    assert out.shape == (B, Tq, D_MODEL)
    # Slightly looser tolerance than f32 roundoff: kernel uses the approximate
    # EUP reciprocal for the softmax denominator (pl.reciprocal(approx=True)).
    np.testing.assert_allclose(np.asarray(out), np.asarray(ref), atol=2e-3, rtol=2e-3)
    print("KERNEL_OK")
</pallas_src>

<mosaic_0001>
module attributes {stable_mosaic.version = 11 : i64} {
  func.func @decoder_layer_kernel(%arg0: i32, %arg1: memref<16x32xf32, #tpu.memory_space<vmem>>, %arg2: memref<16x32xf32, #tpu.memory_space<vmem>>, %arg3: memref<32x96xf32, #tpu.memory_space<vmem>>, %arg4: memref<1x96xf32, #tpu.memory_space<vmem>>, %arg5: memref<32x32xf32, #tpu.memory_space<vmem>>, %arg6: memref<32x96xf32, #tpu.memory_space<vmem>>, %arg7: memref<1x96xf32, #tpu.memory_space<vmem>>, %arg8: memref<32x32xf32, #tpu.memory_space<vmem>>, %arg9: memref<32x64xf32, #tpu.memory_space<vmem>>, %arg10: memref<1x64xf32, #tpu.memory_space<vmem>>, %arg11: memref<64x32xf32, #tpu.memory_space<vmem>>, %arg12: memref<9x32xf32, #tpu.memory_space<vmem>>, %arg13: memref<16x32xf32, #tpu.memory_space<vmem>>) attributes {dimension_semantics = [#tpu.dimension_semantics<arbitrary>], iteration_bounds = array<i64: 1>, scalar_prefetch = 0 : i64, scratch_operands = 0 : i64, tpu.core_type = #tpu.core_type<tc>, window_params = [{pipeline_mode = #tpu.pipeline_mode<synchronous>, transform_indices = @transform_0, window_bounds = array<i64: 16, 32>}, {pipeline_mode = #tpu.pipeline_mode<synchronous>, transform_indices = @transform_1, window_bounds = array<i64: 16, 32>}, {pipeline_mode = #tpu.pipeline_mode<synchronous>, transform_indices = @transform_2, window_bounds = array<i64: 32, 96>}, {pipeline_mode = #tpu.pipeline_mode<synchronous>, transform_indices = @transform_3, window_bounds = array<i64: 1, 96>}, {pipeline_mode = #tpu.pipeline_mode<synchronous>, transform_indices = @transform_4, window_bounds = array<i64: 32, 32>}, {pipeline_mode = #tpu.pipeline_mode<synchronous>, transform_indices = @transform_5, window_bounds = array<i64: 32, 96>}, {pipeline_mode = #tpu.pipeline_mode<synchronous>, transform_indices = @transform_6, window_bounds = array<i64: 1, 96>}, {pipeline_mode = #tpu.pipeline_mode<synchronous>, transform_indices = @transform_7, window_bounds = array<i64: 32, 32>}, {pipeline_mode = #tpu.pipeline_mode<synchronous>, transform_indices = @transform_8, window_bounds = array<i64: 32, 64>}, {pipeline_mode = #tpu.pipeline_mode<synchronous>, transform_indices = @transform_9, window_bounds = array<i64: 1, 64>}, {pipeline_mode = #tpu.pipeline_mode<synchronous>, transform_indices = @transform_10, window_bounds = array<i64: 64, 32>}, {pipeline_mode = #tpu.pipeline_mode<synchronous>, transform_indices = @transform_11, window_bounds = array<i64: 9, 32>}, {pipeline_mode = #tpu.pipeline_mode<synchronous>, transform_indices = @transform_12, window_bounds = array<i64: 16, 32>}]} {
    %c0 = arith.constant 0 : index
    %c0_0 = arith.constant 0 : index
    %0 = vector.load %arg1[%c0, %c0_0] : memref<16x32xf32, #tpu.memory_space<vmem>>, vector<16x32xf32>
    %c0_1 = arith.constant 0 : index
    %c0_2 = arith.constant 0 : index
    %1 = vector.load %arg2[%c0_1, %c0_2] : memref<16x32xf32, #tpu.memory_space<vmem>>, vector<16x32xf32>
    %c0_3 = arith.constant 0 : index
    %c0_4 = arith.constant 0 : index
    %2 = vector.load %arg12[%c0_3, %c0_4] : memref<9x32xf32, #tpu.memory_space<vmem>>, vector<9x32xf32>
    %3 = vector.extract_strided_slice %2 {offsets = [0, 0], sizes = [1, 32], strides = [1, 1]} : vector<9x32xf32> to vector<1x32xf32>
    %4 = vector.extract_strided_slice %2 {offsets = [1, 0], sizes = [1, 32], strides = [1, 1]} : vector<9x32xf32> to vector<1x32xf32>
    %5 = vector.extract_strided_slice %2 {offsets = [2, 0], sizes = [1, 32], strides = [1, 1]} : vector<9x32xf32> to vector<1x32xf32>
    %6 = vector.extract_strided_slice %2 {offsets = [3, 0], sizes = [1, 32], strides = [1, 1]} : vector<9x32xf32> to vector<1x32xf32>
    %7 = vector.extract_strided_slice %2 {offsets = [4, 0], sizes = [1, 32], strides = [1, 1]} : vector<9x32xf32> to vector<1x32xf32>
    %8 = vector.extract_strided_slice %2 {offsets = [5, 0], sizes = [1, 32], strides = [1, 1]} : vector<9x32xf32> to vector<1x32xf32>
    %9 = vector.extract_strided_slice %2 {offsets = [6, 0], sizes = [1, 32], strides = [1, 1]} : vector<9x32xf32> to vector<1x32xf32>
    %10 = vector.extract_strided_slice %2 {offsets = [7, 0], sizes = [1, 32], strides = [1, 1]} : vector<9x32xf32> to vector<1x32xf32>
    %11 = vector.extract_strided_slice %2 {offsets = [8, 0], sizes = [1, 32], strides = [1, 1]} : vector<9x32xf32> to vector<1x32xf32>
    %c0_5 = arith.constant 0 : index
    %c0_6 = arith.constant 0 : index
    %12 = vector.load %arg3[%c0_5, %c0_6] : memref<32x96xf32, #tpu.memory_space<vmem>>, vector<32x96xf32>
    %cst = arith.constant dense<0.000000e+00> : vector<16x96xf32>
    %13 = tpu.matmul %0, %12, %cst {dimension_numbers = #tpu.dot_dimension_numbers<[1], [0], [0], [1], [0, 0, 1, 1], [], []>} : vector<16x32xf32>, vector<32x96xf32>, vector<16x96xf32> -> vector<16x96xf32>
    %c0_7 = arith.constant 0 : index
    %c0_8 = arith.constant 0 : index
    %14 = vector.load %arg4[%c0_7, %c0_8] : memref<1x96xf32, #tpu.memory_space<vmem>>, vector<1x96xf32>
    %15 = vector.broadcast %14 : vector<1x96xf32> to vector<16x96xf32>
    %16 = arith.addf %13, %15 : vector<16x96xf32>
    %17 = vector.extract_strided_slice %16 {offsets = [0, 0], sizes = [16, 32], strides = [1, 1]} : vector<16x96xf32> to vector<16x32xf32>
    %cst_9 = arith.constant 0.353553385 : f32
    %18 = vector.broadcast %cst_9 : f32 to vector<16x32xf32>
    %19 = arith.mulf %17, %18 : vector<16x32xf32>
    %20 = vector.extract_strided_slice %16 {offsets = [0, 32], sizes = [16, 32], strides = [1, 1]} : vector<16x96xf32> to vector<16x32xf32>
    %21 = vector.extract_strided_slice %16 {offsets = [0, 64], sizes = [16, 32], strides = [1, 1]} : vector<16x96xf32> to vector<16x32xf32>
    %22 = vector.shape_cast %19 : vector<16x32xf32> to vector<2x8x32xf32>
    %23 = vector.shape_cast %20 : vector<16x32xf32> to vector<2x8x32xf32>
    %24 = vector.shape_cast %21 : vector<16x32xf32> to vector<2x8x32xf32>
    %25 = vector.extract_strided_slice %22 {offsets = [0, 0, 0], sizes = [2, 8, 8], strides = [1, 1, 1]} : vector<2x8x32xf32> to vector<2x8x8xf32>
    %26 = vector.extract_strided_slice %23 {offsets = [0, 0, 0], sizes = [2, 8, 8], strides = [1, 1, 1]} : vector<2x8x32xf32> to vector<2x8x8xf32>
    "tpu.trace_start"() <{level = 10 : i32, message = "bqd,bkd->bqk"}> : () -> ()
    %cst_10 = arith.constant dense<0.000000e+00> : vector<2x8x8xf32>
    %27 = tpu.matmul %25, %26, %cst_10 {dimension_numbers = #tpu.dot_dimension_numbers<[2], [2], [1], [1], [0, 0, 0, 1, 1, 1], [0], [0]>} : vector<2x8x8xf32>, vector<2x8x8xf32>, vector<2x8x8xf32> -> vector<2x8x8xf32>
    "tpu.trace_stop"() : () -> ()
    %cst_11 = arith.constant dense<0xFF800000> : vector<2x8xf32>
    %28 = vector.multi_reduction <maximumf>, %27, %cst_11 [2] : vector<2x8x8xf32> to vector<2x8xf32>
    %29 = vector.shape_cast %28 : vector<2x8xf32> to vector<2x8x1xf32>
    %30 = vector.broadcast %29 : vector<2x8x1xf32> to vector<2x8x8xf32>
    %31 = arith.subf %27, %30 : vector<2x8x8xf32>
    %32 = math.exp %31 : vector<2x8x8xf32>
    %cst_12 = arith.constant dense<0.000000e+00> : vector<2x8xf32>
    %33 = vector.multi_reduction <add>, %32, %cst_12 [2] : vector<2x8x8xf32> to vector<2x8xf32>
    %34 = vector.shape_cast %33 : vector<2x8xf32> to vector<2x8x1xf32>
    %35 = tpu.reciprocal %34 {approx = true} : vector<2x8x1xf32> -> vector<2x8x1xf32>
    %36 = vector.broadcast %35 : vector<2x8x1xf32> to vector<2x8x8xf32>
    %37 = arith.mulf %32, %36 : vector<2x8x8xf32>
    %38 = vector.extract_strided_slice %24 {offsets = [0, 0, 0], sizes = [2, 8, 8], strides = [1, 1, 1]} : vector<2x8x32xf32> to vector<2x8x8xf32>
    "tpu.trace_start"() <{level = 10 : i32, message = "bqk,bkd->bqd"}> : () -> ()
    %cst_13 = arith.constant dense<0.000000e+00> : vector<2x8x8xf32>
    %39 = tpu.matmul %37, %38, %cst_13 {dimension_numbers = #tpu.dot_dimension_numbers<[2], [1], [1], [2], [0, 0, 0, 1, 1, 2], [0], [0]>} : vector<2x8x8xf32>, vector<2x8x8xf32>, vector<2x8x8xf32> -> vector<2x8x8xf32>
    "tpu.trace_stop"() : () -> ()
    %40 = vector.extract_strided_slice %22 {offsets = [0, 0, 8], sizes = [2, 8, 8], strides = [1, 1, 1]} : vector<2x8x32xf32> to vector<2x8x8xf32>
    %41 = vector.extract_strided_slice %23 {offsets = [0, 0, 8], sizes = [2, 8, 8], strides = [1, 1, 1]} : vector<2x8x32xf32> to vector<2x8x8xf32>
    "tpu.trace_start"() <{level = 10 : i32, message = "bqd,bkd->bqk"}> : () -> ()
    %cst_14 = arith.constant dense<0.000000e+00> : vector<2x8x8xf32>
    %42 = tpu.matmul %40, %41, %cst_14 {dimension_numbers = #tpu.dot_dimension_numbers<[2], [2], [1], [1], [0, 0, 0, 1, 1, 1], [0], [0]>} : vector<2x8x8xf32>, vector<2x8x8xf32>, vector<2x8x8xf32> -> vector<2x8x8xf32>
    "tpu.trace_stop"() : () -> ()
    %cst_15 = arith.constant dense<0xFF800000> : vector<2x8xf32>
    %43 = vector.multi_reduction <maximumf>, %42, %cst_15 [2] : vector<2x8x8xf32> to vector<2x8xf32>
    %44 = vector.shape_cast %43 : vector<2x8xf32> to vector<2x8x1xf32>
    %45 = vector.broadcast %44 : vector<2x8x1xf32> to vector<2x8x8xf32>
    %46 = arith.subf %42, %45 : vector<2x8x8xf32>
    %47 = math.exp %46 : vector<2x8x8xf32>
    %cst_16 = arith.constant dense<0.000000e+00> : vector<2x8xf32>
    %48 = vector.multi_reduction <add>, %47, %cst_16 [2] : vector<2x8x8xf32> to vector<2x8xf32>
    %49 = vector.shape_cast %48 : vector<2x8xf32> to vector<2x8x1xf32>
    %50 = tpu.reciprocal %49 {approx = true} : vector<2x8x1xf32> -> vector<2x8x1xf32>
    %51 = vector.broadcast %50 : vector<2x8x1xf32> to vector<2x8x8xf32>
    %52 = arith.mulf %47, %51 : vector<2x8x8xf32>
    %53 = vector.extract_strided_slice %24 {offsets = [0, 0, 8], sizes = [2, 8, 8], strides = [1, 1, 1]} : vector<2x8x32xf32> to vector<2x8x8xf32>
    "tpu.trace_start"() <{level = 10 : i32, message = "bqk,bkd->bqd"}> : () -> ()
    %cst_17 = arith.constant dense<0.000000e+00> : vector<2x8x8xf32>
    %54 = tpu.matmul %52, %53, %cst_17 {dimension_numbers = #tpu.dot_dimension_numbers<[2], [1], [1], [2], [0, 0, 0, 1, 1, 2], [0], [0]>} : vector<2x8x8xf32>, vector<2x8x8xf32>, vector<2x8x8xf32> -> vector<2x8x8xf32>
    "tpu.trace_stop"() : () -> ()
    %55 = vector.extract_strided_slice %22 {offsets = [0, 0, 16], sizes = [2, 8, 8], strides = [1, 1, 1]} : vector<2x8x32xf32> to vector<2x8x8xf32>
    %56 = vector.extract_strided_slice %23 {offsets = [0, 0, 16], sizes = [2, 8, 8], strides = [1, 1, 1]} : vector<2x8x32xf32> to vector<2x8x8xf32>
    "tpu.trace_start"() <{level = 10 : i32, message = "bqd,bkd->bqk"}> : () -> ()
    %cst_18 = arith.constant dense<0.000000e+00> : vector<2x8x8xf32>
    %57 = tpu.matmul %55, %56, %cst_18 {dimension_numbers = #tpu.dot_dimension_numbers<[2], [2], [1], [1], [0, 0, 0, 1, 1, 1], [0], [0]>} : vector<2x8x8xf32>, vector<2x8x8xf32>, vector<2x8x8xf32> -> vector<2x8x8xf32>
    "tpu.trace_stop"() : () -> ()
    %cst_19 = arith.constant dense<0xFF800000> : vector<2x8xf32>
    %58 = vector.multi_reduction <maximumf>, %57, %cst_19 [2] : vector<2x8x8xf32> to vector<2x8xf32>
    %59 = vector.shape_cast %58 : vector<2x8xf32> to vector<2x8x1xf32>
    %60 = vector.broadcast %59 : vector<2x8x1xf32> to vector<2x8x8xf32>
    %61 = arith.subf %57, %60 : vector<2x8x8xf32>
    %62 = math.exp %61 : vector<2x8x8xf32>
    %cst_20 = arith.constant dense<0.000000e+00> : vector<2x8xf32>
    %63 = vector.multi_reduction <add>, %62, %cst_20 [2] : vector<2x8x8xf32> to vector<2x8xf32>
    %64 = vector.shape_cast %63 : vector<2x8xf32> to vector<2x8x1xf32>
    %65 = tpu.reciprocal %64 {approx = true} : vector<2x8x1xf32> -> vector<2x8x1xf32>
    %66 = vector.broadcast %65 : vector<2x8x1xf32> to vector<2x8x8xf32>
    %67 = arith.mulf %62, %66 : vector<2x8x8xf32>
    %68 = vector.extract_strided_slice %24 {offsets = [0, 0, 16], sizes = [2, 8, 8], strides = [1, 1, 1]} : vector<2x8x32xf32> to vector<2x8x8xf32>
    "tpu.trace_start"() <{level = 10 : i32, message = "bqk,bkd->bqd"}> : () -> ()
    %cst_21 = arith.constant dense<0.000000e+00> : vector<2x8x8xf32>
    %69 = tpu.matmul %67, %68, %cst_21 {dimension_numbers = #tpu.dot_dimension_numbers<[2], [1], [1], [2], [0, 0, 0, 1, 1, 2], [0], [0]>} : vector<2x8x8xf32>, vector<2x8x8xf32>, vector<2x8x8xf32> -> vector<2x8x8xf32>
    "tpu.trace_stop"() : () -> ()
    %70 = vector.extract_strided_slice %22 {offsets = [0, 0, 24], sizes = [2, 8, 8], strides = [1, 1, 1]} : vector<2x8x32xf32> to vector<2x8x8xf32>
    %71 = vector.extract_strided_slice %23 {offsets = [0, 0, 24], sizes = [2, 8, 8], strides = [1, 1, 1]} : vector<2x8x32xf32> to vector<2x8x8xf32>
    "tpu.trace_start"() <{level = 10 : i32, message = "bqd,bkd->bqk"}> : () -> ()
    %cst_22 = arith.constant dense<0.000000e+00> : vector<2x8x8xf32>
    %72 = tpu.matmul %70, %71, %cst_22 {dimension_numbers = #tpu.dot_dimension_numbers<[2], [2], [1], [1], [0, 0, 0, 1, 1, 1], [0], [0]>} : vector<2x8x8xf32>, vector<2x8x8xf32>, vector<2x8x8xf32> -> vector<2x8x8xf32>
    "tpu.trace_stop"() : () -> ()
    %cst_23 = arith.constant dense<0xFF800000> : vector<2x8xf32>
    %73 = vector.multi_reduction <maximumf>, %72, %cst_23 [2] : vector<2x8x8xf32> to vector<2x8xf32>
    %74 = vector.shape_cast %73 : vector<2x8xf32> to vector<2x8x1xf32>
    %75 = vector.broadcast %74 : vector<2x8x1xf32> to vector<2x8x8xf32>
    %76 = arith.subf %72, %75 : vector<2x8x8xf32>
    %77 = math.exp %76 : vector<2x8x8xf32>
    %cst_24 = arith.constant dense<0.000000e+00> : vector<2x8xf32>
    %78 = vector.multi_reduction <add>, %77, %cst_24 [2] : vector<2x8x8xf32> to vector<2x8xf32>
    %79 = vector.shape_cast %78 : vector<2x8xf32> to vector<2x8x1xf32>
    %80 = tpu.reciprocal %79 {approx = true} : vector<2x8x1xf32> -> vector<2x8x1xf32>
    %81 = vector.broadcast %80 : vector<2x8x1xf32> to vector<2x8x8xf32>
    %82 = arith.mulf %77, %81 : vector<2x8x8xf32>
    %83 = vector.extract_strided_slice %24 {offsets = [0, 0, 24], sizes = [2, 8, 8], strides = [1, 1, 1]} : vector<2x8x32xf32> to vector<2x8x8xf32>
    "tpu.trace_start"() <{level = 10 : i32, message = "bqk,bkd->bqd"}> : () -> ()
    %cst_25 = arith.constant dense<0.000000e+00> : vector<2x8x8xf32>
    %84 = tpu.matmul %82, %83, %cst_25 {dimension_numbers = #tpu.dot_dimension_numbers<[2], [1], [1], [2], [0, 0, 0, 1, 1, 2], [0], [0]>} : vector<2x8x8xf32>, vector<2x8x8xf32>, vector<2x8x8xf32> -> vector<2x8x8xf32>
    "tpu.trace_stop"() : () -> ()
    %85 = tpu.concatenate %39, %54, %69, %84 in 2 : vector<2x8x8xf32>, vector<2x8x8xf32>, vector<2x8x8xf32>, vector<2x8x8xf32> -> vector<2x8x32xf32>
    %86 = vector.shape_cast %85 : vector<2x8x32xf32> to vector<16x32xf32>
    %c0_26 = arith.constant 0 : index
    %c0_27 = arith.constant 0 : index
    %87 = vector.load %arg5[%c0_26, %c0_27] : memref<32x32xf32, #tpu.memory_space<vmem>>, vector<32x32xf32>
    %cst_28 = arith.constant dense<0.000000e+00> : vector<16x32xf32>
    %88 = tpu.matmul %86, %87, %cst_28 {dimension_numbers = #tpu.dot_dimension_numbers<[1], [0], [0], [1], [0, 0, 1, 1], [], []>} : vector<16x32xf32>, vector<32x32xf32>, vector<16x32xf32> -> vector<16x32xf32>
    %89 = vector.broadcast %3 : vector<1x32xf32> to vector<16x32xf32>
    %90 = arith.addf %88, %89 : vector<16x32xf32>
    %91 = arith.addf %0, %90 : vector<16x32xf32>
    %cst_29 = arith.constant dense<0.000000e+00> : vector<16xf32>
    %92 = vector.multi_reduction <add>, %91, %cst_29 [1] : vector<16x32xf32> to vector<16xf32>
    %93 = vector.shape_cast %92 : vector<16xf32> to vector<16x1xf32>
    %cst_30 = arith.constant 3.200000e+01 : f32
    %94 = vector.broadcast %cst_30 : f32 to vector<16x1xf32>
    %95 = arith.divf %93, %94 : vector<16x1xf32>
    %96 = vector.broadcast %95 : vector<16x1xf32> to vector<16x32xf32>
    %97 = arith.subf %91, %96 : vector<16x32xf32>
    %98 = arith.mulf %97, %97 : vector<16x32xf32>
    %cst_31 = arith.constant dense<0.000000e+00> : vector<16xf32>
    %99 = vector.multi_reduction <add>, %98, %cst_31 [1] : vector<16x32xf32> to vector<16xf32>
    %100 = vector.shape_cast %99 : vector<16xf32> to vector<16x1xf32>
    %cst_32 = arith.constant 3.200000e+01 : f32
    %101 = vector.broadcast %cst_32 : f32 to vector<16x1xf32>
    %102 = arith.divf %100, %101 : vector<16x1xf32>
    %103 = vector.broadcast %95 : vector<16x1xf32> to vector<16x32xf32>
    %104 = arith.subf %91, %103 : vector<16x32xf32>
    %cst_33 = arith.constant 9.99999974E-6 : f32
    %105 = vector.broadcast %cst_33 : f32 to vector<16x1xf32>
    %106 = arith.addf %102, %105 : vector<16x1xf32>
    %107 = math.rsqrt %106 : vector<16x1xf32>
    %108 = vector.broadcast %107 : vector<16x1xf32> to vector<16x32xf32>
    %109 = arith.mulf %104, %108 : vector<16x32xf32>
    %110 = vector.broadcast %6 : vector<1x32xf32> to vector<16x32xf32>
    %111 = arith.mulf %109, %110 : vector<16x32xf32>
    %112 = vector.broadcast %7 : vector<1x32xf32> to vector<16x32xf32>
    %113 = arith.addf %111, %112 : vector<16x32xf32>
    %c0_34 = arith.constant 0 : index
    %c0_35 = arith.constant 0 : index
    %114 = vector.load %arg6[%c0_34, %c0_35] : memref<32x96xf32, #tpu.memory_space<vmem>>, vector<32x96xf32>
    %c0_36 = arith.constant 0 : index
    %c0_37 = arith.constant 0 : index
    %115 = vector.load %arg7[%c0_36, %c0_37] : memref<1x96xf32, #tpu.memory_space<vmem>>, vector<1x96xf32>
    %116 = vector.extract_strided_slice %114 {offsets = [0, 0], sizes = [32, 32], strides = [1, 1]} : vector<32x96xf32> to vector<32x32xf32>
    %cst_38 = arith.constant dense<0.000000e+00> : vector<16x32xf32>
    %117 = tpu.matmul %113, %116, %cst_38 {dimension_numbers = #tpu.dot_dimension_numbers<[1], [0], [0], [1], [0, 0, 1, 1], [], []>} : vector<16x32xf32>, vector<32x32xf32>, vector<16x32xf32> -> vector<16x32xf32>
    %118 = vector.extract_strided_slice %115 {offsets = [0, 0], sizes = [1, 32], strides = [1, 1]} : vector<1x96xf32> to vector<1x32xf32>
    %119 = vector.broadcast %118 : vector<1x32xf32> to vector<16x32xf32>
    %120 = arith.addf %117, %119 : vector<16x32xf32>
    %cst_39 = arith.constant 0.353553385 : f32
    %121 = vector.broadcast %cst_39 : f32 to vector<16x32xf32>
    %122 = arith.mulf %120, %121 : vector<16x32xf32>
    %123 = vector.extract_strided_slice %114 {offsets = [0, 32], sizes = [32, 64], strides = [1, 1]} : vector<32x96xf32> to vector<32x64xf32>
    %cst_40 = arith.constant dense<0.000000e+00> : vector<16x64xf32>
    %124 = tpu.matmul %1, %123, %cst_40 {dimension_numbers = #tpu.dot_dimension_numbers<[1], [0], [0], [1], [0, 0, 1, 1], [], []>} : vector<16x32xf32>, vector<32x64xf32>, vector<16x64xf32> -> vector<16x64xf32>
    %125 = vector.extract_strided_slice %115 {offsets = [0, 32], sizes = [1, 64], strides = [1, 1]} : vector<1x96xf32> to vector<1x64xf32>
    %126 = vector.broadcast %125 : vector<1x64xf32> to vector<16x64xf32>
    %127 = arith.addf %124, %126 : vector<16x64xf32>
    %128 = vector.extract_strided_slice %127 {offsets = [0, 0], sizes = [16, 32], strides = [1, 1]} : vector<16x64xf32> to vector<16x32xf32>
    %129 = vector.extract_strided_slice %127 {offsets = [0, 32], sizes = [16, 32], strides = [1, 1]} : vector<16x64xf32> to vector<16x32xf32>
    %130 = vector.shape_cast %122 : vector<16x32xf32> to vector<2x8x32xf32>
    %131 = vector.shape_cast %128 : vector<16x32xf32> to vector<2x8x32xf32>
    %132 = vector.shape_cast %129 : vector<16x32xf32> to vector<2x8x32xf32>
    %133 = vector.extract_strided_slice %130 {offsets = [0, 0, 0], sizes = [2, 8, 8], strides = [1, 1, 1]} : vector<2x8x32xf32> to vector<2x8x8xf32>
    %134 = vector.extract_strided_slice %131 {offsets = [0, 0, 0], sizes = [2, 8, 8], strides = [1, 1, 1]} : vector<2x8x32xf32> to vector<2x8x8xf32>
    "tpu.trace_start"() <{level = 10 : i32, message = "bqd,bkd->bqk"}> : () -> ()
    %cst_41 = arith.constant dense<0.000000e+00> : vector<2x8x8xf32>
    %135 = tpu.matmul %133, %134, %cst_41 {dimension_numbers = #tpu.dot_dimension_numbers<[2], [2], [1], [1], [0, 0, 0, 1, 1, 1], [0], [0]>} : vector<2x8x8xf32>, vector<2x8x8xf32>, vector<2x8x8xf32> -> vector<2x8x8xf32>
    "tpu.trace_stop"() : () -> ()
    %cst_42 = arith.constant dense<0xFF800000> : vector<2x8xf32>
    %136 = vector.multi_reduction <maximumf>, %135, %cst_42 [2] : vector<2x8x8xf32> to vector<2x8xf32>
    %137 = vector.shape_cast %136 : vector<2x8xf32> to vector<2x8x1xf32>
    %138 = vector.broadcast %137 : vector<2x8x1xf32> to vector<2x8x8xf32>
    %139 = arith.subf %135, %138 : vector<2x8x8xf32>
    %140 = math.exp %139 : vector<2x8x8xf32>
    %cst_43 = arith.constant dense<0.000000e+00> : vector<2x8xf32>
    %141 = vector.multi_reduction <add>, %140, %cst_43 [2] : vector<2x8x8xf32> to vector<2x8xf32>
    %142 = vector.shape_cast %141 : vector<2x8xf32> to vector<2x8x1xf32>
    %143 = tpu.reciprocal %142 {approx = true} : vector<2x8x1xf32> -> vector<2x8x1xf32>
    %144 = vector.broadcast %143 : vector<2x8x1xf32> to vector<2x8x8xf32>
    %145 = arith.mulf %140, %144 : vector<2x8x8xf32>
    %146 = vector.extract_strided_slice %132 {offsets = [0, 0, 0], sizes = [2, 8, 8], strides = [1, 1, 1]} : vector<2x8x32xf32> to vector<2x8x8xf32>
    "tpu.trace_start"() <{level = 10 : i32, message = "bqk,bkd->bqd"}> : () -> ()
    %cst_44 = arith.constant dense<0.000000e+00> : vector<2x8x8xf32>
    %147 = tpu.matmul %145, %146, %cst_44 {dimension_numbers = #tpu.dot_dimension_numbers<[2], [1], [1], [2], [0, 0, 0, 1, 1, 2], [0], [0]>} : vector<2x8x8xf32>, vector<2x8x8xf32>, vector<2x8x8xf32> -> vector<2x8x8xf32>
    "tpu.trace_stop"() : () -> ()
    %148 = vector.extract_strided_slice %130 {offsets = [0, 0, 8], sizes = [2, 8, 8], strides = [1, 1, 1]} : vector<2x8x32xf32> to vector<2x8x8xf32>
    %149 = vector.extract_strided_slice %131 {offsets = [0, 0, 8], sizes = [2, 8, 8], strides = [1, 1, 1]} : vector<2x8x32xf32> to vector<2x8x8xf32>
    "tpu.trace_start"() <{level = 10 : i32, message = "bqd,bkd->bqk"}> : () -> ()
    %cst_45 = arith.constant dense<0.000000e+00> : vector<2x8x8xf32>
    %150 = tpu.matmul %148, %149, %cst_45 {dimension_numbers = #tpu.dot_dimension_numbers<[2], [2], [1], [1], [0, 0, 0, 1, 1, 1], [0], [0]>} : vector<2x8x8xf32>, vector<2x8x8xf32>, vector<2x8x8xf32> -> vector<2x8x8xf32>
    "tpu.trace_stop"() : () -> ()
    %cst_46 = arith.constant dense<0xFF800000> : vector<2x8xf32>
    %151 = vector.multi_reduction <maximumf>, %150, %cst_46 [2] : vector<2x8x8xf32> to vector<2x8xf32>
    %152 = vector.shape_cast %151 : vector<2x8xf32> to vector<2x8x1xf32>
    %153 = vector.broadcast %152 : vector<2x8x1xf32> to vector<2x8x8xf32>
    %154 = arith.subf %150, %153 : vector<2x8x8xf32>
    %155 = math.exp %154 : vector<2x8x8xf32>
    %cst_47 = arith.constant dense<0.000000e+00> : vector<2x8xf32>
    %156 = vector.multi_reduction <add>, %155, %cst_47 [2] : vector<2x8x8xf32> to vector<2x8xf32>
    %157 = vector.shape_cast %156 : vector<2x8xf32> to vector<2x8x1xf32>
    %158 = tpu.reciprocal %157 {approx = true} : vector<2x8x1xf32> -> vector<2x8x1xf32>
    %159 = vector.broadcast %158 : vector<2x8x1xf32> to vector<2x8x8xf32>
    %160 = arith.mulf %155, %159 : vector<2x8x8xf32>
    %161 = vector.extract_strided_slice %132 {offsets = [0, 0, 8], sizes = [2, 8, 8], strides = [1, 1, 1]} : vector<2x8x32xf32> to vector<2x8x8xf32>
    "tpu.trace_start"() <{level = 10 : i32, message = "bqk,bkd->bqd"}> : () -> ()
    %cst_48 = arith.constant dense<0.000000e+00> : vector<2x8x8xf32>
    %162 = tpu.matmul %160, %161, %cst_48 {dimension_numbers = #tpu.dot_dimension_numbers<[2], [1], [1], [2], [0, 0, 0, 1, 1, 2], [0], [0]>} : vector<2x8x8xf32>, vector<2x8x8xf32>, vector<2x8x8xf32> -> vector<2x8x8xf32>
    "tpu.trace_stop"() : () -> ()
    %163 = vector.extract_strided_slice %130 {offsets = [0, 0, 16], sizes = [2, 8, 8], strides = [1, 1, 1]} : vector<2x8x32xf32> to vector<2x8x8xf32>
    %164 = vector.extract_strided_slice %131 {offsets = [0, 0, 16], sizes = [2, 8, 8], strides = [1, 1, 1]} : vector<2x8x32xf32> to vector<2x8x8xf32>
    "tpu.trace_start"() <{level = 10 : i32, message = "bqd,bkd->bqk"}> : () -> ()
    %cst_49 = arith.constant dense<0.000000e+00> : vector<2x8x8xf32>
    %165 = tpu.matmul %163, %164, %cst_49 {dimension_numbers = #tpu.dot_dimension_numbers<[2], [2], [1], [1], [0, 0, 0, 1, 1, 1], [0], [0]>} : vector<2x8x8xf32>, vector<2x8x8xf32>, vector<2x8x8xf32> -> vector<2x8x8xf32>
    "tpu.trace_stop"() : () -> ()
    %cst_50 = arith.constant dense<0xFF800000> : vector<2x8xf32>
    %166 = vector.multi_reduction <maximumf>, %165, %cst_50 [2] : vector<2x8x8xf32> to vector<2x8xf32>
    %167 = vector.shape_cast %166 : vector<2x8xf32> to vector<2x8x1xf32>
    %168 = vector.broadcast %167 : vector<2x8x1xf32> to vector<2x8x8xf32>
    %169 = arith.subf %165, %168 : vector<2x8x8xf32>
    %170 = math.exp %169 : vector<2x8x8xf32>
    %cst_51 = arith.constant dense<0.000000e+00> : vector<2x8xf32>
    %171 = vector.multi_reduction <add>, %170, %cst_51 [2] : vector<2x8x8xf32> to vector<2x8xf32>
    %172 = vector.shape_cast %171 : vector<2x8xf32> to vector<2x8x1xf32>
    %173 = tpu.reciprocal %172 {approx = true} : vector<2x8x1xf32> -> vector<2x8x1xf32>
    %174 = vector.broadcast %173 : vector<2x8x1xf32> to vector<2x8x8xf32>
    %175 = arith.mulf %170, %174 : vector<2x8x8xf32>
    %176 = vector.extract_strided_slice %132 {offsets = [0, 0, 16], sizes = [2, 8, 8], strides = [1, 1, 1]} : vector<2x8x32xf32> to vector<2x8x8xf32>
    "tpu.trace_start"() <{level = 10 : i32, message = "bqk,bkd->bqd"}> : () -> ()
    %cst_52 = arith.constant dense<0.000000e+00> : vector<2x8x8xf32>
    %177 = tpu.matmul %175, %176, %cst_52 {dimension_numbers = #tpu.dot_dimension_numbers<[2], [1], [1], [2], [0, 0, 0, 1, 1, 2], [0], [0]>} : vector<2x8x8xf32>, vector<2x8x8xf32>, vector<2x8x8xf32> -> vector<2x8x8xf32>
    "tpu.trace_stop"() : () -> ()
    %178 = vector.extract_strided_slice %130 {offsets = [0, 0, 24], sizes = [2, 8, 8], strides = [1, 1, 1]} : vector<2x8x32xf32> to vector<2x8x8xf32>
    %179 = vector.extract_strided_slice %131 {offsets = [0, 0, 24], sizes = [2, 8, 8], strides = [1, 1, 1]} : vector<2x8x32xf32> to vector<2x8x8xf32>
    "tpu.trace_start"() <{level = 10 : i32, message = "bqd,bkd->bqk"}> : () -> ()
    %cst_53 = arith.constant dense<0.000000e+00> : vector<2x8x8xf32>
    %180 = tpu.matmul %178, %179, %cst_53 {dimension_numbers = #tpu.dot_dimension_numbers<[2], [2], [1], [1], [0, 0, 0, 1, 1, 1], [0], [0]>} : vector<2x8x8xf32>, vector<2x8x8xf32>, vector<2x8x8xf32> -> vector<2x8x8xf32>
    "tpu.trace_stop"() : () -> ()
    %cst_54 = arith.constant dense<0xFF800000> : vector<2x8xf32>
    %181 = vector.multi_reduction <maximumf>, %180, %cst_54 [2] : vector<2x8x8xf32> to vector<2x8xf32>
    %182 = vector.shape_cast %181 : vector<2x8xf32> to vector<2x8x1xf32>
    %183 = vector.broadcast %182 : vector<2x8x1xf32> to vector<2x8x8xf32>
    %184 = arith.subf %180, %183 : vector<2x8x8xf32>
    %185 = math.exp %184 : vector<2x8x8xf32>
    %cst_55 = arith.constant dense<0.000000e+00> : vector<2x8xf32>
    %186 = vector.multi_reduction <add>, %185, %cst_55 [2] : vector<2x8x8xf32> to vector<2x8xf32>
    %187 = vector.shape_cast %186 : vector<2x8xf32> to vector<2x8x1xf32>
    %188 = tpu.reciprocal %187 {approx = true} : vector<2x8x1xf32> -> vector<2x8x1xf32>
    %189 = vector.broadcast %188 : vector<2x8x1xf32> to vector<2x8x8xf32>
    %190 = arith.mulf %185, %189 : vector<2x8x8xf32>
    %191 = vector.extract_strided_slice %132 {offsets = [0, 0, 24], sizes = [2, 8, 8], strides = [1, 1, 1]} : vector<2x8x32xf32> to vector<2x8x8xf32>
    "tpu.trace_start"() <{level = 10 : i32, message = "bqk,bkd->bqd"}> : () -> ()
    %cst_56 = arith.constant dense<0.000000e+00> : vector<2x8x8xf32>
    %192 = tpu.matmul %190, %191, %cst_56 {dimension_numbers = #tpu.dot_dimension_numbers<[2], [1], [1], [2], [0, 0, 0, 1, 1, 2], [0], [0]>} : vector<2x8x8xf32>, vector<2x8x8xf32>, vector<2x8x8xf32> -> vector<2x8x8xf32>
    "tpu.trace_stop"() : () -> ()
    %193 = tpu.concatenate %147, %162, %177, %192 in 2 : vector<2x8x8xf32>, vector<2x8x8xf32>, vector<2x8x8xf32>, vector<2x8x8xf32> -> vector<2x8x32xf32>
    %194 = vector.shape_cast %193 : vector<2x8x32xf32> to vector<16x32xf32>
    %c0_57 = arith.constant 0 : index
    %c0_58 = arith.constant 0 : index
    %195 = vector.load %arg8[%c0_57, %c0_58] : memref<32x32xf32, #tpu.memory_space<vmem>>, vector<32x32xf32>
    %cst_59 = arith.constant dense<0.000000e+00> : vector<16x32xf32>
    %196 = tpu.matmul %194, %195, %cst_59 {dimension_numbers = #tpu.dot_dimension_numbers<[1], [0], [0], [1], [0, 0, 1, 1], [], []>} : vector<16x32xf32>, vector<32x32xf32>, vector<16x32xf32> -> vector<16x32xf32>
    %197 = vector.broadcast %4 : vector<1x32xf32> to vector<16x32xf32>
    %198 = arith.addf %196, %197 : vector<16x32xf32>
    %199 = arith.addf %113, %198 : vector<16x32xf32>
    %cst_60 = arith.constant dense<0.000000e+00> : vector<16xf32>
    %200 = vector.multi_reduction <add>, %199, %cst_60 [1] : vector<16x32xf32> to vector<16xf32>
    %201 = vector.shape_cast %200 : vector<16xf32> to vector<16x1xf32>
    %cst_61 = arith.constant 3.200000e+01 : f32
    %202 = vector.broadcast %cst_61 : f32 to vector<16x1xf32>
    %203 = arith.divf %201, %202 : vector<16x1xf32>
    %204 = vector.broadcast %203 : vector<16x1xf32> to vector<16x32xf32>
    %205 = arith.subf %199, %204 : vector<16x32xf32>
    %206 = arith.mulf %205, %205 : vector<16x32xf32>
    %cst_62 = arith.constant dense<0.000000e+00> : vector<16xf32>
    %207 = vector.multi_reduction <add>, %206, %cst_62 [1] : vector<16x32xf32> to vector<16xf32>
    %208 = vector.shape_cast %207 : vector<16xf32> to vector<16x1xf32>
    %cst_63 = arith.constant 3.200000e+01 : f32
    %209 = vector.broadcast %cst_63 : f32 to vector<16x1xf32>
    %210 = arith.divf %208, %209 : vector<16x1xf32>
    %211 = vector.broadcast %203 : vector<16x1xf32> to vector<16x32xf32>
    %212 = arith.subf %199, %211 : vector<16x32xf32>
    %cst_64 = arith.constant 9.99999974E-6 : f32
    %213 = vector.broadcast %cst_64 : f32 to vector<16x1xf32>
    %214 = arith.addf %210, %213 : vector<16x1xf32>
    %215 = math.rsqrt %214 : vector<16x1xf32>
    %216 = vector.broadcast %215 : vector<16x1xf32> to vector<16x32xf32>
    %217 = arith.mulf %212, %216 : vector<16x32xf32>
    %218 = vector.broadcast %8 : vector<1x32xf32> to vector<16x32xf32>
    %219 = arith.mulf %217, %218 : vector<16x32xf32>
    %220 = vector.broadcast %9 : vector<1x32xf32> to vector<16x32xf32>
    %221 = arith.addf %219, %220 : vector<16x32xf32>
    %c0_65 = arith.constant 0 : index
    %c0_66 = arith.constant 0 : index
    %222 = vector.load %arg9[%c0_65, %c0_66] : memref<32x64xf32, #tpu.memory_space<vmem>>, vector<32x64xf32>
    %cst_67 = arith.constant dense<0.000000e+00> : vector<16x64xf32>
    %223 = tpu.matmul %221, %222, %cst_67 {dimension_numbers = #tpu.dot_dimension_numbers<[1], [0], [0], [1], [0, 0, 1, 1], [], []>} : vector<16x32xf32>, vector<32x64xf32>, vector<16x64xf32> -> vector<16x64xf32>
    %c0_68 = arith.constant 0 : index
    %c0_69 = arith.constant 0 : index
    %224 = vector.load %arg10[%c0_68, %c0_69] : memref<1x64xf32, #tpu.memory_space<vmem>>, vector<1x64xf32>
    %225 = vector.broadcast %224 : vector<1x64xf32> to vector<16x64xf32>
    %226 = arith.addf %223, %225 : vector<16x64xf32>
    %cst_70 = arith.constant 0.000000e+00 : f32
    %227 = vector.broadcast %cst_70 : f32 to vector<16x64xf32>
    %228 = arith.maximumf %226, %227 : vector<16x64xf32>
    %c0_71 = arith.constant 0 : index
    %c0_72 = arith.constant 0 : index
    %229 = vector.load %arg11[%c0_71, %c0_72] : memref<64x32xf32, #tpu.memory_space<vmem>>, vector<64x32xf32>
    %cst_73 = arith.constant dense<0.000000e+00> : vector<16x32xf32>
    %230 = tpu.matmul %228, %229, %cst_73 {dimension_numbers = #tpu.dot_dimension_numbers<[1], [0], [0], [1], [0, 0, 1, 1], [], []>} : vector<16x64xf32>, vector<64x32xf32>, vector<16x32xf32> -> vector<16x32xf32>
    %231 = vector.broadcast %5 : vector<1x32xf32> to vector<16x32xf32>
    %232 = arith.addf %230, %231 : vector<16x32xf32>
    %233 = arith.addf %221, %232 : vector<16x32xf32>
    %cst_74 = arith.constant dense<0.000000e+00> : vector<16xf32>
    %234 = vector.multi_reduction <add>, %233, %cst_74 [1] : vector<16x32xf32> to vector<16xf32>
    %235 = vector.shape_cast %234 : vector<16xf32> to vector<16x1xf32>
    %cst_75 = arith.constant 3.200000e+01 : f32
    %236 = vector.broadcast %cst_75 : f32 to vector<16x1xf32>
    %237 = arith.divf %235, %236 : vector<16x1xf32>
    %238 = vector.broadcast %237 : vector<16x1xf32> to vector<16x32xf32>
    %239 = arith.subf %233, %238 : vector<16x32xf32>
    %240 = arith.mulf %239, %239 : vector<16x32xf32>
    %cst_76 = arith.constant dense<0.000000e+00> : vector<16xf32>
    %241 = vector.multi_reduction <add>, %240, %cst_76 [1] : vector<16x32xf32> to vector<16xf32>
    %242 = vector.shape_cast %241 : vector<16xf32> to vector<16x1xf32>
    %cst_77 = arith.constant 3.200000e+01 : f32
    %243 = vector.broadcast %cst_77 : f32 to vector<16x1xf32>
    %244 = arith.divf %242, %243 : vector<16x1xf32>
    %245 = vector.broadcast %237 : vector<16x1xf32> to vector<16x32xf32>
    %246 = arith.subf %233, %245 : vector<16x32xf32>
    %cst_78 = arith.constant 9.99999974E-6 : f32
    %247 = vector.broadcast %cst_78 : f32 to vector<16x1xf32>
    %248 = arith.addf %244, %247 : vector<16x1xf32>
    %249 = math.rsqrt %248 : vector<16x1xf32>
    %250 = vector.broadcast %249 : vector<16x1xf32> to vector<16x32xf32>
    %251 = arith.mulf %246, %250 : vector<16x32xf32>
    %252 = vector.broadcast %10 : vector<1x32xf32> to vector<16x32xf32>
    %253 = arith.mulf %251, %252 : vector<16x32xf32>
    %254 = vector.broadcast %11 : vector<1x32xf32> to vector<16x32xf32>
    %255 = arith.addf %253, %254 : vector<16x32xf32>
    %c0_79 = arith.constant 0 : index
    %c0_80 = arith.constant 0 : index
    %256 = vector.load %arg13[%c0_79, %c0_80] : memref<16x32xf32, #tpu.memory_space<vmem>>, vector<16x32xf32>
    tpu.vector_store %arg13[%c0_79, %c0_80], %255 {strides = array<i32>} : memref<16x32xf32, #tpu.memory_space<vmem>>, vector<16x32xf32>,
    return
  }
  func.func @transform_0(%arg0: i32) -> (i32, i32) {
    %c0_i32 = arith.constant 0 : i32
    %c0_i32_0 = arith.constant 0 : i32
    %c0_i32_1 = arith.constant 0 : i32
    return %c0_i32, %c0_i32_0 : i32, i32
  }
  func.func @transform_1(%arg0: i32) -> (i32, i32) {
    %c0_i32 = arith.constant 0 : i32
    %c0_i32_0 = arith.constant 0 : i32
    %c0_i32_1 = arith.constant 0 : i32
    return %c0_i32, %c0_i32_0 : i32, i32
  }
  func.func @transform_2(%arg0: i32) -> (i32, i32) {
    %c0_i32 = arith.constant 0 : i32
    %c0_i32_0 = arith.constant 0 : i32
    %c0_i32_1 = arith.constant 0 : i32
    return %c0_i32, %c0_i32_0 : i32, i32
  }
  func.func @transform_3(%arg0: i32) -> (i32, i32) {
    %c0_i32 = arith.constant 0 : i32
    %c0_i32_0 = arith.constant 0 : i32
    %c0_i32_1 = arith.constant 0 : i32
    return %c0_i32, %c0_i32_0 : i32, i32
  }
  func.func @transform_4(%arg0: i32) -> (i32, i32) {
    %c0_i32 = arith.constant 0 : i32
    %c0_i32_0 = arith.constant 0 : i32
    %c0_i32_1 = arith.constant 0 : i32
    return %c0_i32, %c0_i32_0 : i32, i32
  }
  func.func @transform_5(%arg0: i32) -> (i32, i32) {
    %c0_i32 = arith.constant 0 : i32
    %c0_i32_0 = arith.constant 0 : i32
    %c0_i32_1 = arith.constant 0 : i32
    return %c0_i32, %c0_i32_0 : i32, i32
  }
  func.func @transform_6(%arg0: i32) -> (i32, i32) {
    %c0_i32 = arith.constant 0 : i32
    %c0_i32_0 = arith.constant 0 : i32
    %c0_i32_1 = arith.constant 0 : i32
    return %c0_i32, %c0_i32_0 : i32, i32
  }
  func.func @transform_7(%arg0: i32) -> (i32, i32) {
    %c0_i32 = arith.constant 0 : i32
    %c0_i32_0 = arith.constant 0 : i32
    %c0_i32_1 = arith.constant 0 : i32
    return %c0_i32, %c0_i32_0 : i32, i32
  }
  func.func @transform_8(%arg0: i32) -> (i32, i32) {
    %c0_i32 = arith.constant 0 : i32
    %c0_i32_0 = arith.constant 0 : i32
    %c0_i32_1 = arith.constant 0 : i32
    return %c0_i32, %c0_i32_0 : i32, i32
  }
  func.func @transform_9(%arg0: i32) -> (i32, i32) {
    %c0_i32 = arith.constant 0 : i32
    %c0_i32_0 = arith.constant 0 : i32
    %c0_i32_1 = arith.constant 0 : i32
    return %c0_i32, %c0_i32_0 : i32, i32
  }
  func.func @transform_10(%arg0: i32) -> (i32, i32) {
    %c0_i32 = arith.constant 0 : i32
    %c0_i32_0 = arith.constant 0 : i32
    %c0_i32_1 = arith.constant 0 : i32
    return %c0_i32, %c0_i32_0 : i32, i32
  }
  func.func @transform_11(%arg0: i32) -> (i32, i32) {
    %c0_i32 = arith.constant 0 : i32
    %c0_i32_0 = arith.constant 0 : i32
    %c0_i32_1 = arith.constant 0 : i32
    return %c0_i32, %c0_i32_0 : i32, i32
  }
  func.func @transform_12(%arg0: i32) -> (i32, i32) {
    %c0_i32 = arith.constant 0 : i32
    %c0_i32_0 = arith.constant 0 : i32
    %c0_i32_1 = arith.constant 0 : i32
    return %c0_i32, %c0_i32_0 : i32, i32
  }
}

</mosaic_0001>

<llo_original>
// kernel: tpu_custom_call.1
$region0: #{tpu_custom_call.1}
  #allocation0 [shape = 'u32[]', space=smem, size = 0x4, offset = 0x4, fixed_abs, tag = 'smem constant byte address 0x4 - core index']
  #allocation1 [shape = 'u32[72,128]{1,0:T(1,128)}', space=vmem, size = 0x9000, scoped, tag = 'internal scratch']
  %s0 = inlined_call_operand.hbm [shape: f32[16,32], index: 0, kind: input, shape index: {}]
  %s1 = inlined_call_operand.hbm [shape: f32[16,32], index: 1, kind: input, shape index: {}]
  %s2 = inlined_call_operand.vmem [shape: f32[32,96], index: 2, kind: input, shape index: {}]
  %s3 = inlined_call_operand.vmem [shape: f32[1,96], index: 3, kind: input, shape index: {}]
  %s4 = inlined_call_operand.vmem [shape: f32[32,32], index: 4, kind: input, shape index: {}]
  %s5 = inlined_call_operand.vmem [shape: f32[32,96], index: 5, kind: input, shape index: {}]
  %s6 = inlined_call_operand.vmem [shape: f32[1,96], index: 6, kind: input, shape index: {}]
  %s7 = inlined_call_operand.hbm [shape: f32[32,32], index: 7, kind: input, shape index: {}]
  %s8 = inlined_call_operand.hbm [shape: f32[32,64], index: 8, kind: input, shape index: {}]
  %s9 = inlined_call_operand.vmem [shape: f32[1,64], index: 9, kind: input, shape index: {}]
  %s10 = inlined_call_operand.vmem [shape: f32[64,32], index: 10, kind: input, shape index: {}]
  %s11 = inlined_call_operand.hbm [shape: f32[9,32], index: 11, kind: input, shape index: {}]
  %s12 = inlined_call_operand.hbm [shape: f32[16,32], index: 12, kind: output, shape index: {}]
  %s13 = sld [smem:[#allocation0]]
  $region78: #{tpu_custom_call.1} parent=0
    _
  %s15 = ssub.s32 1, %s13
  %s16 = scalar_select 0, %s15, %s13
  $region1: #{tpu_custom_call.1} parent=0
    #allocation2 [shape = 'u8[8192]{0}', space=vmem, size = 0x2000, scoped, tag = 'input window, operand 0, single buffered']
    #allocation3 [shape = 's32[1]{0}', space=sflag, size = 0x4, scoped, tag = 'scoped memory for tpu_custom_call.1']
    #allocation4 [shape = 's32[1]{0}', space=sflag, size = 0x4, scoped, tag = 'scoped memory for tpu_custom_call.1']
    #allocation5 [shape = 'u8[8192]{0}', space=vmem, size = 0x2000, scoped, tag = 'input window, operand 1, single buffered']
    #allocation6 [shape = 's32[1]{0}', space=sflag, size = 0x4, scoped, tag = 'scoped memory for tpu_custom_call.1']
    #allocation7 [shape = 'u8[16384]{0}', space=vmem, size = 0x4000, scoped, tag = 'input window, operand 7, single buffered']
    #allocation8 [shape = 'u8[16384]{0}', space=vmem, size = 0x4000, scoped, tag = 'input window, operand 8, single buffered']
    #allocation9 [shape = 's32[1]{0}', space=sflag, size = 0x4, scoped, tag = 'scoped memory for tpu_custom_call.1']
    #allocation10 [shape = 'u8[8192]{0}', space=vmem, size = 0x2000, scoped, tag = 'input window, operand 11, single buffered']
    #allocation11 [shape = 'u8[8192]{0}', space=vmem, size = 0x2000, scoped, tag = 'output window, operand 0, single buffered']
    %17 = vsyncpa [#allocation3], 0
    %18 = vsyncpa [#allocation6], 0
    %19 = vsyncpa [#allocation9], 0
    %20 = vsyncpa [#allocation4], 0
    // Predicated region
    $region2: #{tpu_custom_call.1} parent=1 // pred_check
      _
    $region3: #{tpu_custom_call.1} parent=1 // pred_check_branch
      %22 = sbr.rel (0) target = $region5
    $region4: #{tpu_custom_call.1} parent=1 // pred_region
      %24 = vsyncadd [#allocation3], 0
      %s25 = sshll.u32 %s0, 4
      %s26 = int_to_ptr.hbm [resolvable:$true] %s25
      %s27 = sshll.u32 [#allocation2], 4
      %s28 = int_to_ptr.vmem [resolvable:$true] %s27
      %33 = dma.hbm_to_vmem [thread:$0]  %s26, 256, %s28, [#allocation3], 128, 128, 8
    $region5: #{tpu_custom_call.1} parent=1 // pred_fallthru
      _
    // Predicated region
    $region6: #{tpu_custom_call.1} parent=1 // pred_check
      _
    $region7: #{tpu_custom_call.1} parent=1 // pred_check_branch
      %35 = sbr.rel (0) target = $region9
    $region8: #{tpu_custom_call.1} parent=1 // pred_region
      %37 = vsyncadd [#allocation6], 0
      %s38 = sshll.u32 %s1, 4
      %s39 = int_to_ptr.hbm [resolvable:$true] %s38
      %s40 = sshll.u32 [#allocation5], 4
      %s41 = int_to_ptr.vmem [resolvable:$true] %s40
      %46 = dma.hbm_to_vmem [thread:$0]  %s39, 256, %s41, [#allocation6], 128, 128, 8
    $region9: #{tpu_custom_call.1} parent=1 // pred_fallthru
      _
    // Predicated region
    $region10: #{tpu_custom_call.1} parent=1 // pred_check
      _
    $region11: #{tpu_custom_call.1} parent=1 // pred_check_branch
      %48 = sbr.rel (0) target = $region13
    $region12: #{tpu_custom_call.1} parent=1 // pred_region
      _
    $region13: #{tpu_custom_call.1} parent=1 // pred_fallthru
      _
    // Predicated region
    $region14: #{tpu_custom_call.1} parent=1 // pred_check
      _
    $region15: #{tpu_custom_call.1} parent=1 // pred_check_branch
      %50 = sbr.rel (0) target = $region17
    $region16: #{tpu_custom_call.1} parent=1 // pred_region
      _
    $region17: #{tpu_custom_call.1} parent=1 // pred_fallthru
      _
    // Predicated region
    $region18: #{tpu_custom_call.1} parent=1 // pred_check
      _
    $region19: #{tpu_custom_call.1} parent=1 // pred_check_branch
      %52 = sbr.rel (0) target = $region21
    $region20: #{tpu_custom_call.1} parent=1 // pred_region
      _
    $region21: #{tpu_custom_call.1} parent=1 // pred_fallthru
      _
    // Predicated region
    $region22: #{tpu_custom_call.1} parent=1 // pred_check
      _
    $region23: #{tpu_custom_call.1} parent=1 // pred_check_branch
      %54 = sbr.rel (0) target = $region25
    $region24: #{tpu_custom_call.1} parent=1 // pred_region
      _
    $region25: #{tpu_custom_call.1} parent=1 // pred_fallthru
      _
    // Predicated region
    $region26: #{tpu_custom_call.1} parent=1 // pred_check
      _
    $region27: #{tpu_custom_call.1} parent=1 // pred_check_branch
      %56 = sbr.rel (0) target = $region29
    $region28: #{tpu_custom_call.1} parent=1 // pred_region
      _
    $region29: #{tpu_custom_call.1} parent=1 // pred_fallthru
      _
    // Predicated region
    $region30: #{tpu_custom_call.1} parent=1 // pred_check
      _
    $region31: #{tpu_custom_call.1} parent=1 // pred_check_branch
      %58 = sbr.rel (0) target = $region33
    $region32: #{tpu_custom_call.1} parent=1 // pred_region
      %60 = vsyncadd [#allocation6], 0
      %s61 = sshll.u32 %s7, 4
      %s62 = int_to_ptr.hbm [resolvable:$true] %s61
      %s63 = sshll.u32 [#allocation7], 4
      %s64 = int_to_ptr.vmem [resolvable:$true] %s63
      %69 = dma.hbm_to_vmem [thread:$0]  %s62, 512, %s64, [#allocation6], 128, 128, 8
    $region33: #{tpu_custom_call.1} parent=1 // pred_fallthru
      _
    // Predicated region
    $region34: #{tpu_custom_call.1} parent=1 // pred_check
      _
    $region35: #{tpu_custom_call.1} parent=1 // pred_check_branch
      %71 = sbr.rel (0) target = $region37
    $region36: #{tpu_custom_call.1} parent=1 // pred_region
      %73 = vsyncadd [#allocation9], 0
      %s74 = sshll.u32 %s8, 4
      %s75 = int_to_ptr.hbm [resolvable:$true] %s74
      %s76 = sshll.u32 [#allocation8], 4
      %s77 = int_to_ptr.vmem [resolvable:$true] %s76
      %82 = dma.hbm_to_vmem [thread:$0]  %s75, 512, %s77, [#allocation9], 128, 128, 8
    $region37: #{tpu_custom_call.1} parent=1 // pred_fallthru
      _
    // Predicated region
    $region38: #{tpu_custom_call.1} parent=1 // pred_check
      _
    $region39: #{tpu_custom_call.1} parent=1 // pred_check_branch
      %84 = sbr.rel (0) target = $region41
    $region40: #{tpu_custom_call.1} parent=1 // pred_region
      _
    $region41: #{tpu_custom_call.1} parent=1 // pred_fallthru
      _
    // Predicated region
    $region42: #{tpu_custom_call.1} parent=1 // pred_check
      _
    $region43: #{tpu_custom_call.1} parent=1 // pred_check_branch
      %86 = sbr.rel (0) target = $region45
    $region44: #{tpu_custom_call.1} parent=1 // pred_region
      _
    $region45: #{tpu_custom_call.1} parent=1 // pred_fallthru
      _
    // Predicated region
    $region46: #{tpu_custom_call.1} parent=1 // pred_check
      _
    $region47: #{tpu_custom_call.1} parent=1 // pred_check_branch
      %88 = sbr.rel (0) target = $region49
    $region48: #{tpu_custom_call.1} parent=1 // pred_region
      %90 = vsyncadd [#allocation9], 0
      %s91 = sshll.u32 %s11, 4
      %s92 = int_to_ptr.hbm [resolvable:$true] %s91
      %s93 = sshll.u32 [#allocation10], 4
      %s94 = int_to_ptr.vmem [resolvable:$true] %s93
      %99 = dma.hbm_to_vmem [thread:$0]  %s92, 256, %s94, [#allocation9], 128, 128, 8
    $region49: #{tpu_custom_call.1} parent=1 // pred_fallthru
      _
    // Predicated region
    $region50: #{tpu_custom_call.1} parent=1 // pred_check
      _
    $region51: #{tpu_custom_call.1} parent=1 // pred_check_branch
      %101 = sbr.rel (0) target = $region53
    $region52: #{tpu_custom_call.1} parent=1 // pred_region
      %103 = dma.done [#allocation3], 256
    $region53: #{tpu_custom_call.1} parent=1 // pred_fallthru
      _
    // Predicated region
    $region54: #{tpu_custom_call.1} parent=1 // pred_check
      _
    $region55: #{tpu_custom_call.1} parent=1 // pred_check_branch
      %105 = sbr.rel (0) target = $region57
    $region56: #{tpu_custom_call.1} parent=1 // pred_region
      %107 = dma.done [#allocation6], 256
    $region57: #{tpu_custom_call.1} parent=1 // pred_fallthru
      _
    // Predicated region
    $region58: #{tpu_custom_call.1} parent=1 // pred_check
      _
    $region59: #{tpu_custom_call.1} parent=1 // pred_check_branch
      %109 = sbr.rel (0) target = $region61
    $region60: #{tpu_custom_call.1} parent=1 // pred_region
      %111 = dma.done [#allocation6], 512
    $region61: #{tpu_custom_call.1} parent=1 // pred_fallthru
      _
    // Predicated region
    $region62: #{tpu_custom_call.1} parent=1 // pred_check
      _
    $region63: #{tpu_custom_call.1} parent=1 // pred_check_branch
      %113 = sbr.rel (0) target = $region65
    $region64: #{tpu_custom_call.1} parent=1 // pred_region
      %115 = dma.done [#allocation9], 512
    $region65: #{tpu_custom_call.1} parent=1 // pred_fallthru
      _
    // Predicated region
    $region66: #{tpu_custom_call.1} parent=1 // pred_check
      _
    $region67: #{tpu_custom_call.1} parent=1 // pred_check_branch
      %117 = sbr.rel (0) target = $region69
    $region68: #{tpu_custom_call.1} parent=1 // pred_region
      %119 = dma.done [#allocation9], 256
    $region69: #{tpu_custom_call.1} parent=1 // pred_fallthru
      _
    %v120 = vld [vmem:[#allocation2] sm:$0xff]
    %v121 = vld [vmem:[#allocation2 + $0x8] sm:$0xff]
    %v122 = vld [vmem:[#allocation5] sm:$0xff]
    %v123 = vld [vmem:[#allocation5 + $0x8] sm:$0xff]
    %v124 = vld [vmem:[#allocation10] sm:$0xff]
    %v125 = vld [vmem:[#allocation10 + $0x8] sm:$0x1]
    %v126 = vld [vmem:[%s2] sm:$0xff]
    %v127 = vld [vmem:[%s2 + $0x8] sm:$0xff]
    %v128 = vld [vmem:[%s2 + $0x10] sm:$0xff]
    %v129 = vld [vmem:[%s2 + $0x18] sm:$0xff]
    %v130 = vld [vmem:[%s3] sm:$0x1]
    %v132 = vperm.slane %v130, 0
    %vm134 = vcmask 261120
    %v136 = vsel %vm134, %v120, 0
    %v139 = vsel %vm134, %v121, 0
    %141 = vmatpush.msra.mxu0 0.0
    %142 = vmatpush.msra.mxu0 0.0
    %143 = vmatpush.msra.mxu0 0.0
    %144 = vmatpush.msra.mxu0 0.0
    %145 = vmatpush.msra.mxu0 0.0
    %146 = vmatpush.msra.mxu0 0.0
    %147 = vmatpush.msra.mxu0 0.0
    %148 = vmatpush.msra.mxu0 0.0
    %149 = vmatpush.msra.mxu0 0.0
    %150 = vmatpush.msra.mxu0 0.0
    %151 = vmatpush.msra.mxu0 0.0
    %152 = vmatpush.msra.mxu0 0.0
    %153 = vmatpush.msra.mxu0 %v129
    %154 = vmatpush.msra.mxu0 %v128
    %155 = vmatpush.msra.mxu0 %v127
    %156 = vmatpush.msra.mxu0 %v126
    %157 = vmatmul.f32.gmra.mxu0 %v136
    %v158 = vpop.f32.mrf.mxu0
    %v159 = vadd.f32 %v132, %v158
    %160 = vmatmul.f32.gmra.mxu0 %v139
    %v161 = vpop.f32.mrf.mxu0
    %v162 = vadd.f32 %v132, %v161
    %163 = vdwg.mxu0
    %v164 = vmul.f32 %v159, 0.35355338
    %v165 = vmul.f32 %v162, 0.35355338
    %167 = vrot.lane.b32.xlu0 %v159, 96
    %v168 = vpop.permute.xlu0 %167
    %vm169 = vcmask 64512
    %v171 = vsel %vm169, %v164, 0
    %v173 = vsel %vm169, %v168, 0
    %175 = vmatpush.xpose.msra.mxu0 0.0
    %176 = vmatpush.xpose.msra.mxu0 0.0
    %177 = vmatpush.xpose.msra.mxu0 0.0
    %178 = vmatpush.xpose.msra.mxu0 0.0
    %179 = vmatpush.xpose.msra.mxu0 0.0
    %180 = vmatpush.xpose.msra.mxu0 0.0
    %181 = vmatpush.xpose.msra.mxu0 0.0
    %182 = vmatpush.xpose.msra.mxu0 0.0
    %183 = vmatpush.xpose.msra.mxu0 0.0
    %184 = vmatpush.xpose.msra.mxu0 0.0
    %185 = vmatpush.xpose.msra.mxu0 0.0
    %186 = vmatpush.xpose.msra.mxu0 0.0
    %187 = vmatpush.xpose.msra.mxu0 0.0
    %188 = vmatpush.xpose.msra.mxu0 0.0
    %189 = vmatpush.xpose.msra.mxu0 0.0
    %190 = vmatpush.xpose.msra.mxu0 %v173
    %191 = vmatmul.f32.gmra.mxu0 %v171
    %v192 = vpop.f32.mrf.mxu0
    %v193 = vadd.f32 0.0, %v192
    %194 = vdwg.mxu0
    %196 = vrot.lane.b32.xlu0 %v162, 96
    %v197 = vpop.permute.xlu0 %196
    %v199 = vsel %vm169, %v165, 0
    %v201 = vsel %vm169, %v197, 0
    %203 = vmatpush.xpose.msra.mxu0 0.0
    %204 = vmatpush.xpose.msra.mxu0 0.0
    %205 = vmatpush.xpose.msra.mxu0 0.0
    %206 = vmatpush.xpose.msra.mxu0 0.0
    %207 = vmatpush.xpose.msra.mxu0 0.0
    %208 = vmatpush.xpose.msra.mxu0 0.0
    %209 = vmatpush.xpose.msra.mxu0 0.0
    %210 = vmatpush.xpose.msra.mxu0 0.0
    %211 = vmatpush.xpose.msra.mxu0 0.0
    %212 = vmatpush.xpose.msra.mxu0 0.0
    %213 = vmatpush.xpose.msra.mxu0 0.0
    %214 = vmatpush.xpose.msra.mxu0 0.0
    %215 = vmatpush.xpose.msra.mxu0 0.0
    %216 = vmatpush.xpose.msra.mxu0 0.0
    %217 = vmatpush.xpose.msra.mxu0 0.0
    %218 = vmatpush.xpose.msra.mxu0 %v201
    %219 = vmatmul.f32.gmra.mxu0 %v199
    %v220 = vpop.f32.mrf.mxu0
    %v221 = vadd.f32 0.0, %v220
    %222 = vdwg.mxu0
    %v223 = vsel %vm169, %v193, -inf
    %224 = vmax.xlane.f32.xlu0 %v223
    %v225 = vpop.xlane.xlu0 %224
    %v226 = vsel %vm169, %v221, -inf
    %227 = vmax.xlane.f32.xlu0 %v226
    %v228 = vpop.xlane.xlu0 %227
    %v229 = vsub.f32 %v193, %v225
    %v230 = vsub.f32 %v221, %v228
    %v231 = vmul.f32 %v229, 1.442695
    %v232 = vpow.pop %v231
    %v233 = vmul.f32 %v230, 1.442695
    %v234 = vpow.pop %v233
    %v235 = vsel %vm169, %v232, 0.0
    %236 = vadd.xlane.f32.xlu0 %v235
    %v237 = vpop.xlane.xlu0 %236
    %v238 = vsel %vm169, %v234, 0.0
    %239 = vadd.xlane.f32.xlu0 %v238
    %v240 = vpop.xlane.xlu0 %239
    %v241 = vrcp.pop %v237
    %v242 = vrcp.pop %v240
    %v243 = vmul.f32 %v232, %v241
    %v244 = vmul.f32 %v234, %v242
    %245 = vrot.lane.b32.xlu0 %v159, 64
    %v246 = vpop.permute.xlu0 %245
    %v249 = vsel %vm169, %v243, 0
    %251 = vmatpush.msra.mxu0 0.0
    %252 = vmatpush.msra.mxu0 0.0
    %253 = vmatpush.msra.mxu0 0.0
    %254 = vmatpush.msra.mxu0 0.0
    %255 = vmatpush.msra.mxu0 0.0
    %256 = vmatpush.msra.mxu0 0.0
    %257 = vmatpush.msra.mxu0 0.0
    %258 = vmatpush.msra.mxu0 0.0
    %259 = vmatpush.msra.mxu0 0.0
    %260 = vmatpush.msra.mxu0 0.0
    %261 = vmatpush.msra.mxu0 0.0
    %262 = vmatpush.msra.mxu0 0.0
    %263 = vmatpush.msra.mxu0 0.0
    %264 = vmatpush.msra.mxu0 0.0
    %265 = vmatpush.msra.mxu0 0.0
    %266 = vmatpush.msra.mxu0 %v246
    %267 = vmatmul.f32.gmra.mxu0 %v249
    %v268 = vpop.f32.mrf.mxu0
    %v269 = vadd.f32 0.0, %v268
    %270 = vdwg.mxu0
    %271 = vrot.lane.b32.xlu0 %v162, 64
    %v272 = vpop.permute.xlu0 %271
    %v275 = vsel %vm169, %v244, 0
    %277 = vmatpush.msra.mxu0 0.0
    %278 = vmatpush.msra.mxu0 0.0
    %279 = vmatpush.msra.mxu0 0.0
    %280 = vmatpush.msra.mxu0 0.0
    %281 = vmatpush.msra.mxu0 0.0
    %282 = vmatpush.msra.mxu0 0.0
    %283 = vmatpush.msra.mxu0 0.0
    %284 = vmatpush.msra.mxu0 0.0
    %285 = vmatpush.msra.mxu0 0.0
    %286 = vmatpush.msra.mxu0 0.0
    %287 = vmatpush.msra.mxu0 0.0
    %288 = vmatpush.msra.mxu0 0.0
    %289 = vmatpush.msra.mxu0 0.0
    %290 = vmatpush.msra.mxu0 0.0
    %291 = vmatpush.msra.mxu0 0.0
    %292 = vmatpush.msra.mxu0 %v272
    %293 = vmatmul.f32.gmra.mxu0 %v275
    %v294 = vpop.f32.mrf.mxu0
    %v295 = vadd.f32 0.0, %v294
    %296 = vdwg.mxu0
    %297 = vrot.lane.b32.xlu0 %v164, 120
    %v298 = vpop.permute.xlu0 %297
    %299 = vrot.lane.b32.xlu0 %v159, 88
    %v300 = vpop.permute.xlu0 %299
    %v301 = vsel %vm169, %v298, 0
    %v303 = vsel %vm169, %v300, 0
    %305 = vmatpush.xpose.msra.mxu0 0.0
    %306 = vmatpush.xpose.msra.mxu0 0.0
    %307 = vmatpush.xpose.msra.mxu0 0.0
    %308 = vmatpush.xpose.msra.mxu0 0.0
    %309 = vmatpush.xpose.msra.mxu0 0.0
    %310 = vmatpush.xpose.msra.mxu0 0.0
    %311 = vmatpush.xpose.msra.mxu0 0.0
    %312 = vmatpush.xpose.msra.mxu0 0.0
    %313 = vmatpush.xpose.msra.mxu0 0.0
    %314 = vmatpush.xpose.msra.mxu0 0.0
    %315 = vmatpush.xpose.msra.mxu0 0.0
    %316 = vmatpush.xpose.msra.mxu0 0.0
    %317 = vmatpush.xpose.msra.mxu0 0.0
    %318 = vmatpush.xpose.msra.mxu0 0.0
    %319 = vmatpush.xpose.msra.mxu0 0.0
    %320 = vmatpush.xpose.msra.mxu0 %v303
    %321 = vmatmul.f32.gmra.mxu0 %v301
    %v322 = vpop.f32.mrf.mxu0
    %v323 = vadd.f32 0.0, %v322
    %324 = vdwg.mxu0
    %325 = vrot.lane.b32.xlu0 %v165, 120
    %v326 = vpop.permute.xlu0 %325
    %327 = vrot.lane.b32.xlu0 %v162, 88
    %v328 = vpop.permute.xlu0 %327
    %v329 = vsel %vm169, %v326, 0
    %v331 = vsel %vm169, %v328, 0
    %333 = vmatpush.xpose.msra.mxu0 0.0
    %334 = vmatpush.xpose.msra.mxu0 0.0
    %335 = vmatpush.xpose.msra.mxu0 0.0
    %336 = vmatpush.xpose.msra.mxu0 0.0
    %337 = vmatpush.xpose.msra.mxu0 0.0
    %338 = vmatpush.xpose.msra.mxu0 0.0
    %339 = vmatpush.xpose.msra.mxu0 0.0
    %340 = vmatpush.xpose.msra.mxu0 0.0
    %341 = vmatpush.xpose.msra.mxu0 0.0
    %342 = vmatpush.xpose.msra.mxu0 0.0
    %343 = vmatpush.xpose.msra.mxu0 0.0
    %344 = vmatpush.xpose.msra.mxu0 0.0
    %345 = vmatpush.xpose.msra.mxu0 0.0
    %346 = vmatpush.xpose.msra.mxu0 0.0
    %347 = vmatpush.xpose.msra.mxu0 0.0
    %348 = vmatpush.xpose.msra.mxu0 %v331
    %349 = vmatmul.f32.gmra.mxu0 %v329
    %v350 = vpop.f32.mrf.mxu0
    %v351 = vadd.f32 0.0, %v350
    %352 = vdwg.mxu0
    %v353 = vsel %vm169, %v323, -inf
    %354 = vmax.xlane.f32.xlu0 %v353
    %v355 = vpop.xlane.xlu0 %354
    %v356 = vsel %vm169, %v351, -inf
    %357 = vmax.xlane.f32.xlu0 %v356
    %v358 = vpop.xlane.xlu0 %357
    %v359 = vsub.f32 %v323, %v355
    %v360 = vsub.f32 %v351, %v358
    %v361 = vmul.f32 %v359, 1.442695
    %v362 = vpow.pop %v361
    %v363 = vmul.f32 %v360, 1.442695
    %v364 = vpow.pop %v363
    %v365 = vsel %vm169, %v362, 0.0
    %366 = vadd.xlane.f32.xlu0 %v365
    %v367 = vpop.xlane.xlu0 %366
    %v368 = vsel %vm169, %v364, 0.0
    %369 = vadd.xlane.f32.xlu0 %v368
    %v370 = vpop.xlane.xlu0 %369
    %v371 = vrcp.pop %v367
    %v372 = vrcp.pop %v370
    %v373 = vmul.f32 %v362, %v371
    %v374 = vmul.f32 %v364, %v372
    %375 = vrot.lane.b32.xlu0 %v159, 56
    %v376 = vpop.permute.xlu0 %375
    %v379 = vsel %vm169, %v373, 0
    %381 = vmatpush.msra.mxu0 0.0
    %382 = vmatpush.msra.mxu0 0.0
    %383 = vmatpush.msra.mxu0 0.0
    %384 = vmatpush.msra.mxu0 0.0
    %385 = vmatpush.msra.mxu0 0.0
    %386 = vmatpush.msra.mxu0 0.0
    %387 = vmatpush.msra.mxu0 0.0
    %388 = vmatpush.msra.mxu0 0.0
    %389 = vmatpush.msra.mxu0 0.0
    %390 = vmatpush.msra.mxu0 0.0
    %391 = vmatpush.msra.mxu0 0.0
    %392 = vmatpush.msra.mxu0 0.0
    %393 = vmatpush.msra.mxu0 0.0
    %394 = vmatpush.msra.mxu0 0.0
    %395 = vmatpush.msra.mxu0 0.0
    %396 = vmatpush.msra.mxu0 %v376
    %397 = vmatmul.f32.gmra.mxu0 %v379
    %v398 = vpop.f32.mrf.mxu0
    %v399 = vadd.f32 0.0, %v398
    %400 = vdwg.mxu0
    %401 = vrot.lane.b32.xlu0 %v162, 56
    %v402 = vpop.permute.xlu0 %401
    %v405 = vsel %vm169, %v374, 0
    %407 = vmatpush.msra.mxu0 0.0
    %408 = vmatpush.msra.mxu0 0.0
    %409 = vmatpush.msra.mxu0 0.0
    %410 = vmatpush.msra.mxu0 0.0
    %411 = vmatpush.msra.mxu0 0.0
    %412 = vmatpush.msra.mxu0 0.0
    %413 = vmatpush.msra.mxu0 0.0
    %414 = vmatpush.msra.mxu0 0.0
    %415 = vmatpush.msra.mxu0 0.0
    %416 = vmatpush.msra.mxu0 0.0
    %417 = vmatpush.msra.mxu0 0.0
    %418 = vmatpush.msra.mxu0 0.0
    %419 = vmatpush.msra.mxu0 0.0
    %420 = vmatpush.msra.mxu0 0.0
    %421 = vmatpush.msra.mxu0 0.0
    %422 = vmatpush.msra.mxu0 %v402
    %423 = vmatmul.f32.gmra.mxu0 %v405
    %v424 = vpop.f32.mrf.mxu0
    %v425 = vadd.f32 0.0, %v424
    %426 = vdwg.mxu0
    %427 = vrot.lane.b32.xlu0 %v164, 112
    %v428 = vpop.permute.xlu0 %427
    %429 = vrot.lane.b32.xlu0 %v159, 80
    %v430 = vpop.permute.xlu0 %429
    %v431 = vsel %vm169, %v428, 0
    %v433 = vsel %vm169, %v430, 0
    %435 = vmatpush.xpose.msra.mxu0 0.0
    %436 = vmatpush.xpose.msra.mxu0 0.0
    %437 = vmatpush.xpose.msra.mxu0 0.0
    %438 = vmatpush.xpose.msra.mxu0 0.0
    %439 = vmatpush.xpose.msra.mxu0 0.0
    %440 = vmatpush.xpose.msra.mxu0 0.0
    %441 = vmatpush.xpose.msra.mxu0 0.0
    %442 = vmatpush.xpose.msra.mxu0 0.0
    %443 = vmatpush.xpose.msra.mxu0 0.0
    %444 = vmatpush.xpose.msra.mxu0 0.0
    %445 = vmatpush.xpose.msra.mxu0 0.0
    %446 = vmatpush.xpose.msra.mxu0 0.0
    %447 = vmatpush.xpose.msra.mxu0 0.0
    %448 = vmatpush.xpose.msra.mxu0 0.0
    %449 = vmatpush.xpose.msra.mxu0 0.0
    %450 = vmatpush.xpose.msra.mxu0 %v433
    %451 = vmatmul.f32.gmra.mxu0 %v431
    %v452 = vpop.f32.mrf.mxu0
    %v453 = vadd.f32 0.0, %v452
    %454 = vdwg.mxu0
    %455 = vrot.lane.b32.xlu0 %v165, 112
    %v456 = vpop.permute.xlu0 %455
    %457 = vrot.lane.b32.xlu0 %v162, 80
    %v458 = vpop.permute.xlu0 %457
    %v459 = vsel %vm169, %v456, 0
    %v461 = vsel %vm169, %v458, 0
    %463 = vmatpush.xpose.msra.mxu0 0.0
    %464 = vmatpush.xpose.msra.mxu0 0.0
    %465 = vmatpush.xpose.msra.mxu0 0.0
    %466 = vmatpush.xpose.msra.mxu0 0.0
    %467 = vmatpush.xpose.msra.mxu0 0.0
    %468 = vmatpush.xpose.msra.mxu0 0.0
    %469 = vmatpush.xpose.msra.mxu0 0.0
    %470 = vmatpush.xpose.msra.mxu0 0.0
    %471 = vmatpush.xpose.msra.mxu0 0.0
    %472 = vmatpush.xpose.msra.mxu0 0.0
    %473 = vmatpush.xpose.msra.mxu0 0.0
    %474 = vmatpush.xpose.msra.mxu0 0.0
    %475 = vmatpush.xpose.msra.mxu0 0.0
    %476 = vmatpush.xpose.msra.mxu0 0.0
    %477 = vmatpush.xpose.msra.mxu0 0.0
    %478 = vmatpush.xpose.msra.mxu0 %v461
    %479 = vmatmul.f32.gmra.mxu0 %v459
    %v480 = vpop.f32.mrf.mxu0
    %v481 = vadd.f32 0.0, %v480
    %482 = vdwg.mxu0
    %v483 = vsel %vm169, %v453, -inf
    %484 = vmax.xlane.f32.xlu0 %v483
    %v485 = vpop.xlane.xlu0 %484
    %v486 = vsel %vm169, %v481, -inf
    %487 = vmax.xlane.f32.xlu0 %v486
    %v488 = vpop.xlane.xlu0 %487
    %v489 = vsub.f32 %v453, %v485
    %v490 = vsub.f32 %v481, %v488
    %v491 = vmul.f32 %v489, 1.442695
    %v492 = vpow.pop %v491
    %v493 = vmul.f32 %v490, 1.442695
    %v494 = vpow.pop %v493
    %v495 = vsel %vm169, %v492, 0.0
    %496 = vadd.xlane.f32.xlu0 %v495
    %v497 = vpop.xlane.xlu0 %496
    %v498 = vsel %vm169, %v494, 0.0
    %499 = vadd.xlane.f32.xlu0 %v498
    %v500 = vpop.xlane.xlu0 %499
    %v501 = vrcp.pop %v497
    %v502 = vrcp.pop %v500
    %v503 = vmul.f32 %v492, %v501
    %v504 = vmul.f32 %v494, %v502
    %505 = vrot.lane.b32.xlu0 %v159, 48
    %v506 = vpop.permute.xlu0 %505
    %v509 = vsel %vm169, %v503, 0
    %511 = vmatpush.msra.mxu0 0.0
    %512 = vmatpush.msra.mxu0 0.0
    %513 = vmatpush.msra.mxu0 0.0
    %514 = vmatpush.msra.mxu0 0.0
    %515 = vmatpush.msra.mxu0 0.0
    %516 = vmatpush.msra.mxu0 0.0
    %517 = vmatpush.msra.mxu0 0.0
    %518 = vmatpush.msra.mxu0 0.0
    %519 = vmatpush.msra.mxu0 0.0
    %520 = vmatpush.msra.mxu0 0.0
    %521 = vmatpush.msra.mxu0 0.0
    %522 = vmatpush.msra.mxu0 0.0
    %523 = vmatpush.msra.mxu0 0.0
    %524 = vmatpush.msra.mxu0 0.0
    %525 = vmatpush.msra.mxu0 0.0
    %526 = vmatpush.msra.mxu0 %v506
    %527 = vmatmul.f32.gmra.mxu0 %v509
    %v528 = vpop.f32.mrf.mxu0
    %v529 = vadd.f32 0.0, %v528
    %530 = vdwg.mxu0
    %531 = vrot.lane.b32.xlu0 %v162, 48
    %v532 = vpop.permute.xlu0 %531
    %v535 = vsel %vm169, %v504, 0
    %537 = vmatpush.msra.mxu0 0.0
    %538 = vmatpush.msra.mxu0 0.0
    %539 = vmatpush.msra.mxu0 0.0
    %540 = vmatpush.msra.mxu0 0.0
    %541 = vmatpush.msra.mxu0 0.0
    %542 = vmatpush.msra.mxu0 0.0
    %543 = vmatpush.msra.mxu0 0.0
    %544 = vmatpush.msra.mxu0 0.0
    %545 = vmatpush.msra.mxu0 0.0
    %546 = vmatpush.msra.mxu0 0.0
    %547 = vmatpush.msra.mxu0 0.0
    %548 = vmatpush.msra.mxu0 0.0
    %549 = vmatpush.msra.mxu0 0.0
    %550 = vmatpush.msra.mxu0 0.0
    %551 = vmatpush.msra.mxu0 0.0
    %552 = vmatpush.msra.mxu0 %v532
    %553 = vmatmul.f32.gmra.mxu0 %v535
    %v554 = vpop.f32.mrf.mxu0
    %v555 = vadd.f32 0.0, %v554
    %556 = vdwg.mxu0
    %557 = vrot.lane.b32.xlu0 %v164, 104
    %v558 = vpop.permute.xlu0 %557
    %559 = vrot.lane.b32.xlu0 %v159, 72
    %v560 = vpop.permute.xlu0 %559
    %v561 = vsel %vm169, %v558, 0
    %v563 = vsel %vm169, %v560, 0
    %565 = vmatpush.xpose.msra.mxu0 0.0
    %566 = vmatpush.xpose.msra.mxu0 0.0
    %567 = vmatpush.xpose.msra.mxu0 0.0
    %568 = vmatpush.xpose.msra.mxu0 0.0
    %569 = vmatpush.xpose.msra.mxu0 0.0
    %570 = vmatpush.xpose.msra.mxu0 0.0
    %571 = vmatpush.xpose.msra.mxu0 0.0
    %572 = vmatpush.xpose.msra.mxu0 0.0
    %573 = vmatpush.xpose.msra.mxu0 0.0
    %574 = vmatpush.xpose.msra.mxu0 0.0
    %575 = vmatpush.xpose.msra.mxu0 0.0
    %576 = vmatpush.xpose.msra.mxu0 0.0
    %577 = vmatpush.xpose.msra.mxu0 0.0
    %578 = vmatpush.xpose.msra.mxu0 0.0
    %579 = vmatpush.xpose.msra.mxu0 0.0
    %580 = vmatpush.xpose.msra.mxu0 %v563
    %581 = vmatmul.f32.gmra.mxu0 %v561
    %v582 = vpop.f32.mrf.mxu0
    %v583 = vadd.f32 0.0, %v582
    %584 = vdwg.mxu0
    %585 = vrot.lane.b32.xlu0 %v165, 104
    %v586 = vpop.permute.xlu0 %585
    %587 = vrot.lane.b32.xlu0 %v162, 72
    %v588 = vpop.permute.xlu0 %587
    %v589 = vsel %vm169, %v586, 0
    %v591 = vsel %vm169, %v588, 0
    %593 = vmatpush.xpose.msra.mxu0 0.0
    %594 = vmatpush.xpose.msra.mxu0 0.0
    %595 = vmatpush.xpose.msra.mxu0 0.0
    %596 = vmatpush.xpose.msra.mxu0 0.0
    %597 = vmatpush.xpose.msra.mxu0 0.0
    %598 = vmatpush.xpose.msra.mxu0 0.0
    %599 = vmatpush.xpose.msra.mxu0 0.0
    %600 = vmatpush.xpose.msra.mxu0 0.0
    %601 = vmatpush.xpose.msra.mxu0 0.0
    %602 = vmatpush.xpose.msra.mxu0 0.0
    %603 = vmatpush.xpose.msra.mxu0 0.0
    %604 = vmatpush.xpose.msra.mxu0 0.0
    %605 = vmatpush.xpose.msra.mxu0 0.0
    %606 = vmatpush.xpose.msra.mxu0 0.0
    %607 = vmatpush.xpose.msra.mxu0 0.0
    %608 = vmatpush.xpose.msra.mxu0 %v591
    %609 = vmatmul.f32.gmra.mxu0 %v589
    %v610 = vpop.f32.mrf.mxu0
    %v611 = vadd.f32 0.0, %v610
    %612 = vdwg.mxu0
    %v613 = vsel %vm169, %v583, -inf
    %614 = vmax.xlane.f32.xlu0 %v613
    %v615 = vpop.xlane.xlu0 %614
    %v616 = vsel %vm169, %v611, -inf
    %617 = vmax.xlane.f32.xlu0 %v616
    %v618 = vpop.xlane.xlu0 %617
    %v619 = vsub.f32 %v583, %v615
    %v620 = vsub.f32 %v611, %v618
    %v621 = vmul.f32 %v619, 1.442695
    %v622 = vpow.pop %v621
    %v623 = vmul.f32 %v620, 1.442695
    %v624 = vpow.pop %v623
    %v625 = vsel %vm169, %v622, 0.0
    %626 = vadd.xlane.f32.xlu0 %v625
    %v627 = vpop.xlane.xlu0 %626
    %v628 = vsel %vm169, %v624, 0.0
    %629 = vadd.xlane.f32.xlu0 %v628
    %v630 = vpop.xlane.xlu0 %629
    %v631 = vrcp.pop %v627
    %v632 = vrcp.pop %v630
    %v633 = vmul.f32 %v622, %v631
    %v634 = vmul.f32 %v624, %v632
    %635 = vrot.lane.b32.xlu0 %v159, 40
    %v636 = vpop.permute.xlu0 %635
    %v639 = vsel %vm169, %v633, 0
    %641 = vmatpush.msra.mxu0 0.0
    %642 = vmatpush.msra.mxu0 0.0
    %643 = vmatpush.msra.mxu0 0.0
    %644 = vmatpush.msra.mxu0 0.0
    %645 = vmatpush.msra.mxu0 0.0
    %646 = vmatpush.msra.mxu0 0.0
    %647 = vmatpush.msra.mxu0 0.0
    %648 = vmatpush.msra.mxu0 0.0
    %649 = vmatpush.msra.mxu0 0.0
    %650 = vmatpush.msra.mxu0 0.0
    %651 = vmatpush.msra.mxu0 0.0
    %652 = vmatpush.msra.mxu0 0.0
    %653 = vmatpush.msra.mxu0 0.0
    %654 = vmatpush.msra.mxu0 0.0
    %655 = vmatpush.msra.mxu0 0.0
    %656 = vmatpush.msra.mxu0 %v636
    %657 = vmatmul.f32.gmra.mxu0 %v639
    %v658 = vpop.f32.mrf.mxu0
    %v659 = vadd.f32 0.0, %v658
    %660 = vdwg.mxu0
    %661 = vrot.lane.b32.xlu0 %v162, 40
    %v662 = vpop.permute.xlu0 %661
    %v665 = vsel %vm169, %v634, 0
    %667 = vmatpush.msra.mxu0 0.0
    %668 = vmatpush.msra.mxu0 0.0
    %669 = vmatpush.msra.mxu0 0.0
    %670 = vmatpush.msra.mxu0 0.0
    %671 = vmatpush.msra.mxu0 0.0
    %672 = vmatpush.msra.mxu0 0.0
    %673 = vmatpush.msra.mxu0 0.0
    %674 = vmatpush.msra.mxu0 0.0
    %675 = vmatpush.msra.mxu0 0.0
    %676 = vmatpush.msra.mxu0 0.0
    %677 = vmatpush.msra.mxu0 0.0
    %678 = vmatpush.msra.mxu0 0.0
    %679 = vmatpush.msra.mxu0 0.0
    %680 = vmatpush.msra.mxu0 0.0
    %681 = vmatpush.msra.mxu0 0.0
    %682 = vmatpush.msra.mxu0 %v662
    %683 = vmatmul.f32.gmra.mxu0 %v665
    %v684 = vpop.f32.mrf.mxu0
    %v685 = vadd.f32 0.0, %v684
    %686 = vdwg.mxu0
    %689 = vrot.lane.b32.xlu0 %v399, 8
    %v690 = vpop.permute.xlu0 %689
    %691 = vrot.lane.b32.xlu0 %v425, 8
    %v692 = vpop.permute.xlu0 %691
    %697 = vrot.lane.b32.xlu0 %v529, 16
    %v698 = vpop.permute.xlu0 %697
    %699 = vrot.lane.b32.xlu0 %v555, 16
    %v700 = vpop.permute.xlu0 %699
    %705 = vrot.lane.b32.xlu0 %v659, 24
    %v706 = vpop.permute.xlu0 %705
    %707 = vrot.lane.b32.xlu0 %v685, 24
    %v708 = vpop.permute.xlu0 %707
    %v711 = vsel %vm169, %v269, %v690
    %v712 = vsel %vm169, %v295, %v692
    %vm713 = vcmask 130048
    %v714 = vsel %vm713, %v711, %v698
    %v715 = vsel %vm713, %v712, %v700
    %vm716 = vcmask 195584
    %v717 = vsel %vm716, %v714, %v706
    %v718 = vsel %vm716, %v715, %v708
    %v719 = vld [vmem:[%s4] sm:$0xff]
    %v720 = vld [vmem:[%s4 + $0x8] sm:$0xff]
    %v721 = vld [vmem:[%s4 + $0x10] sm:$0xff]
    %v722 = vld [vmem:[%s4 + $0x18] sm:$0xff]
    %v723 = vperm.slane %v124, 0
    %v725 = vsel %vm134, %v717, 0
    %v728 = vsel %vm134, %v718, 0
    %730 = vmatpush.msra.mxu0 0.0
    %731 = vmatpush.msra.mxu0 0.0
    %732 = vmatpush.msra.mxu0 0.0
    %733 = vmatpush.msra.mxu0 0.0
    %734 = vmatpush.msra.mxu0 0.0
    %735 = vmatpush.msra.mxu0 0.0
    %736 = vmatpush.msra.mxu0 0.0
    %737 = vmatpush.msra.mxu0 0.0
    %738 = vmatpush.msra.mxu0 0.0
    %739 = vmatpush.msra.mxu0 0.0
    %740 = vmatpush.msra.mxu0 0.0
    %741 = vmatpush.msra.mxu0 0.0
    %742 = vmatpush.msra.mxu0 %v722
    %743 = vmatpush.msra.mxu0 %v721
    %744 = vmatpush.msra.mxu0 %v720
    %745 = vmatpush.msra.mxu0 %v719
    %746 = vmatmul.f32.gmra.mxu0 %v725
    %v747 = vpop.f32.mrf.mxu0
    %v748 = vadd.f32 %v723, %v747
    %749 = vmatmul.f32.gmra.mxu0 %v728
    %v750 = vpop.f32.mrf.mxu0
    %v751 = vadd.f32 %v723, %v750
    %752 = vdwg.mxu0
    %v753 = vadd.f32 %v120, %v748
    %v754 = vadd.f32 %v121, %v751
    %v755 = vsel %vm134, %v753, 0.0
    %756 = vadd.xlane.f32.xlu0 %v755
    %v757 = vpop.xlane.xlu0 %756
    %v758 = vsel %vm134, %v754, 0.0
    %759 = vadd.xlane.f32.xlu0 %v758
    %v760 = vpop.xlane.xlu0 %759
    %v761 = vrcp.pop 32.0
    %v762 = vmul.f32 32.0, %v761
    %v763 = vsub.f32 1.0, %v762
    %v764 = vmul.f32 %v761, %v763
    %v765 = vadd.f32 %v761, %v764
    %vm766 = vweird.f32 %v761
    %v767 = vsel %vm766, %v761, %v765
    %v768 = vmul.f32 %v757, %v767
    %v769 = vmul.f32 %v760, %v767
    %v770 = vsub.f32 %v753, %v768
    %v771 = vsub.f32 %v754, %v769
    %v772 = vmul.f32 %v770, %v770
    %v773 = vmul.f32 %v771, %v771
    %v774 = vsel %vm134, %v772, 0.0
    %775 = vadd.xlane.f32.xlu0 %v774
    %v776 = vpop.xlane.xlu0 %775
    %v777 = vsel %vm134, %v773, 0.0
    %778 = vadd.xlane.f32.xlu0 %v777
    %v779 = vpop.xlane.xlu0 %778
    %v780 = vmul.f32 %v776, %v767
    %v781 = vmul.f32 %v779, %v767
    %v782 = vadd.f32 %v780, 1e-05
    %v783 = vadd.f32 %v781, 1e-05
    %v784 = vrsqrt.pop %v782
    %v785 = vmul.f32 %v784, %v782
    %v786 = vmul.f32 %v785, %v784
    %v787 = vmul.f32 0.5, %v786
    %v788 = vsub.f32 1.5, %v787
    %v789 = vmul.f32 %v784, %v788
    %vm790 = vweird.f32 %v782
    %vm791 = vweird.f32 %v784
    %vm792 = vmor %vm790, %vm791
    %v793 = vsel %vm792, %v784, %v789
    %v794 = vrsqrt.pop %v783
    %v795 = vmul.f32 %v794, %v783
    %v796 = vmul.f32 %v795, %v794
    %v797 = vmul.f32 0.5, %v796
    %v798 = vsub.f32 1.5, %v797
    %v799 = vmul.f32 %v794, %v798
    %vm800 = vweird.f32 %v783
    %vm801 = vweird.f32 %v794
    %vm802 = vmor %vm800, %vm801
    %v803 = vsel %vm802, %v794, %v799
    %v804 = vmul.f32 %v770, %v793
    %v805 = vmul.f32 %v771, %v803
    %v806 = vperm.slane %v124, 3
    %v807 = vmul.f32 %v804, %v806
    %v808 = vmul.f32 %v805, %v806
    %v809 = vperm.slane %v124, 4
    %v810 = vadd.f32 %v807, %v809
    %v811 = vadd.f32 %v808, %v809
    %v812 = vld [vmem:[%s5] sm:$0xff]
    %v813 = vld [vmem:[%s5 + $0x8] sm:$0xff]
    %v814 = vld [vmem:[%s5 + $0x10] sm:$0xff]
    %v815 = vld [vmem:[%s5 + $0x18] sm:$0xff]
    %v816 = vld [vmem:[%s6] sm:$0x1]
    %v818 = vperm.slane %v816, 0
    %v821 = vsel %vm134, %v810, 0
    %v824 = vsel %vm134, %v811, 0
    %826 = vmatpush.msra.mxu0 0.0
    %827 = vmatpush.msra.mxu0 0.0
    %828 = vmatpush.msra.mxu0 0.0
    %829 = vmatpush.msra.mxu0 0.0
    %830 = vmatpush.msra.mxu0 0.0
    %831 = vmatpush.msra.mxu0 0.0
    %832 = vmatpush.msra.mxu0 0.0
    %833 = vmatpush.msra.mxu0 0.0
    %834 = vmatpush.msra.mxu0 0.0
    %835 = vmatpush.msra.mxu0 0.0
    %836 = vmatpush.msra.mxu0 0.0
    %837 = vmatpush.msra.mxu0 0.0
    %838 = vmatpush.msra.mxu0 %v815
    %839 = vmatpush.msra.mxu0 %v814
    %840 = vmatpush.msra.mxu0 %v813
    %841 = vmatpush.msra.mxu0 %v812
    %842 = vmatmul.f32.gmra.mxu0 %v821
    %v843 = vpop.f32.mrf.mxu0
    %v844 = vadd.f32 %v818, %v843
    %845 = vmatmul.f32.gmra.mxu0 %v824
    %v846 = vpop.f32.mrf.mxu0
    %v847 = vadd.f32 %v818, %v846
    %848 = vdwg.mxu0
    %v849 = vmul.f32 %v844, 0.35355338
    %v850 = vmul.f32 %v847, 0.35355338
    %855 = vrot.lane.b32.xlu0 %v812, 96
    %v856 = vpop.permute.xlu0 %855
    %857 = vrot.lane.b32.xlu0 %v813, 96
    %v858 = vpop.permute.xlu0 %857
    %859 = vrot.lane.b32.xlu0 %v814, 96
    %v860 = vpop.permute.xlu0 %859
    %861 = vrot.lane.b32.xlu0 %v815, 96
    %v862 = vpop.permute.xlu0 %861
    %867 = vrot.lane.b32.xlu0 %v818, 96
    %v868 = vpop.permute.xlu0 %867
    %v871 = vsel %vm134, %v122, 0
    %v874 = vsel %vm134, %v123, 0
    %876 = vmatpush.msra.mxu0 0.0
    %877 = vmatpush.msra.mxu0 0.0
    %878 = vmatpush.msra.mxu0 0.0
    %879 = vmatpush.msra.mxu0 0.0
    %880 = vmatpush.msra.mxu0 0.0
    %881 = vmatpush.msra.mxu0 0.0
    %882 = vmatpush.msra.mxu0 0.0
    %883 = vmatpush.msra.mxu0 0.0
    %884 = vmatpush.msra.mxu0 0.0
    %885 = vmatpush.msra.mxu0 0.0
    %886 = vmatpush.msra.mxu0 0.0
    %887 = vmatpush.msra.mxu0 0.0
    %888 = vmatpush.msra.mxu0 %v862
    %889 = vmatpush.msra.mxu0 %v860
    %890 = vmatpush.msra.mxu0 %v858
    %891 = vmatpush.msra.mxu0 %v856
    %892 = vmatmul.f32.gmra.mxu0 %v871
    %v893 = vpop.f32.mrf.mxu0
    %v894 = vadd.f32 %v868, %v893
    %895 = vmatmul.f32.gmra.mxu0 %v874
    %v896 = vpop.f32.mrf.mxu0
    %v897 = vadd.f32 %v868, %v896
    %898 = vdwg.mxu0
    %v900 = vsel %vm169, %v849, 0
    %v903 = vsel %vm169, %v894, 0
    %905 = vmatpush.xpose.msra.mxu0 0.0
    %906 = vmatpush.xpose.msra.mxu0 0.0
    %907 = vmatpush.xpose.msra.mxu0 0.0
    %908 = vmatpush.xpose.msra.mxu0 0.0
    %909 = vmatpush.xpose.msra.mxu0 0.0
    %910 = vmatpush.xpose.msra.mxu0 0.0
    %911 = vmatpush.xpose.msra.mxu0 0.0
    %912 = vmatpush.xpose.msra.mxu0 0.0
    %913 = vmatpush.xpose.msra.mxu0 0.0
    %914 = vmatpush.xpose.msra.mxu0 0.0
    %915 = vmatpush.xpose.msra.mxu0 0.0
    %916 = vmatpush.xpose.msra.mxu0 0.0
    %917 = vmatpush.xpose.msra.mxu0 0.0
    %918 = vmatpush.xpose.msra.mxu0 0.0
    %919 = vmatpush.xpose.msra.mxu0 0.0
    %920 = vmatpush.xpose.msra.mxu0 %v903
    %921 = vmatmul.f32.gmra.mxu0 %v900
    %v922 = vpop.f32.mrf.mxu0
    %v923 = vadd.f32 0.0, %v922
    %924 = vdwg.mxu0
    %v926 = vsel %vm169, %v850, 0
    %v929 = vsel %vm169, %v897, 0
    %931 = vmatpush.xpose.msra.mxu0 0.0
    %932 = vmatpush.xpose.msra.mxu0 0.0
    %933 = vmatpush.xpose.msra.mxu0 0.0
    %934 = vmatpush.xpose.msra.mxu0 0.0
    %935 = vmatpush.xpose.msra.mxu0 0.0
    %936 = vmatpush.xpose.msra.mxu0 0.0
    %937 = vmatpush.xpose.msra.mxu0 0.0
    %938 = vmatpush.xpose.msra.mxu0 0.0
    %939 = vmatpush.xpose.msra.mxu0 0.0
    %940 = vmatpush.xpose.msra.mxu0 0.0
    %941 = vmatpush.xpose.msra.mxu0 0.0
    %942 = vmatpush.xpose.msra.mxu0 0.0
    %943 = vmatpush.xpose.msra.mxu0 0.0
    %944 = vmatpush.xpose.msra.mxu0 0.0
    %945 = vmatpush.xpose.msra.mxu0 0.0
    %946 = vmatpush.xpose.msra.mxu0 %v929
    %947 = vmatmul.f32.gmra.mxu0 %v926
    %v948 = vpop.f32.mrf.mxu0
    %v949 = vadd.f32 0.0, %v948
    %950 = vdwg.mxu0
    %v951 = vsel %vm169, %v923, -inf
    %952 = vmax.xlane.f32.xlu0 %v951
    %v953 = vpop.xlane.xlu0 %952
    %v954 = vsel %vm169, %v949, -inf
    %955 = vmax.xlane.f32.xlu0 %v954
    %v956 = vpop.xlane.xlu0 %955
    %v957 = vsub.f32 %v923, %v953
    %v958 = vsub.f32 %v949, %v956
    %v959 = vmul.f32 %v957, 1.442695
    %v960 = vpow.pop %v959
    %v961 = vmul.f32 %v958, 1.442695
    %v962 = vpow.pop %v961
    %v963 = vsel %vm169, %v960, 0.0
    %964 = vadd.xlane.f32.xlu0 %v963
    %v965 = vpop.xlane.xlu0 %964
    %v966 = vsel %vm169, %v962, 0.0
    %967 = vadd.xlane.f32.xlu0 %v966
    %v968 = vpop.xlane.xlu0 %967
    %v969 = vrcp.pop %v965
    %v970 = vrcp.pop %v968
    %v971 = vmul.f32 %v960, %v969
    %v972 = vmul.f32 %v962, %v970
    %973 = vrot.lane.b32.xlu0 %v894, 96
    %v974 = vpop.permute.xlu0 %973
    %v977 = vsel %vm169, %v971, 0
    %979 = vmatpush.msra.mxu0 0.0
    %980 = vmatpush.msra.mxu0 0.0
    %981 = vmatpush.msra.mxu0 0.0
    %982 = vmatpush.msra.mxu0 0.0
    %983 = vmatpush.msra.mxu0 0.0
    %984 = vmatpush.msra.mxu0 0.0
    %985 = vmatpush.msra.mxu0 0.0
    %986 = vmatpush.msra.mxu0 0.0
    %987 = vmatpush.msra.mxu0 0.0
    %988 = vmatpush.msra.mxu0 0.0
    %989 = vmatpush.msra.mxu0 0.0
    %990 = vmatpush.msra.mxu0 0.0
    %991 = vmatpush.msra.mxu0 0.0
    %992 = vmatpush.msra.mxu0 0.0
    %993 = vmatpush.msra.mxu0 0.0
    %994 = vmatpush.msra.mxu0 %v974
    %995 = vmatmul.f32.gmra.mxu0 %v977
    %v996 = vpop.f32.mrf.mxu0
    %v997 = vadd.f32 0.0, %v996
    %998 = vdwg.mxu0
    %999 = vrot.lane.b32.xlu0 %v897, 96
    %v1000 = vpop.permute.xlu0 %999
    %v1003 = vsel %vm169, %v972, 0
    %1005 = vmatpush.msra.mxu0 0.0
    %1006 = vmatpush.msra.mxu0 0.0
    %1007 = vmatpush.msra.mxu0 0.0
    %1008 = vmatpush.msra.mxu0 0.0
    %1009 = vmatpush.msra.mxu0 0.0
    %1010 = vmatpush.msra.mxu0 0.0
    %1011 = vmatpush.msra.mxu0 0.0
    %1012 = vmatpush.msra.mxu0 0.0
    %1013 = vmatpush.msra.mxu0 0.0
    %1014 = vmatpush.msra.mxu0 0.0
    %1015 = vmatpush.msra.mxu0 0.0
    %1016 = vmatpush.msra.mxu0 0.0
    %1017 = vmatpush.msra.mxu0 0.0
    %1018 = vmatpush.msra.mxu0 0.0
    %1019 = vmatpush.msra.mxu0 0.0
    %1020 = vmatpush.msra.mxu0 %v1000
    %1021 = vmatmul.f32.gmra.mxu0 %v1003
    %v1022 = vpop.f32.mrf.mxu0
    %v1023 = vadd.f32 0.0, %v1022
    %1024 = vdwg.mxu0
    %1025 = vrot.lane.b32.xlu0 %v849, 120
    %v1026 = vpop.permute.xlu0 %1025
    %1027 = vrot.lane.b32.xlu0 %v894, 120
    %v1028 = vpop.permute.xlu0 %1027
    %v1029 = vsel %vm169, %v1026, 0
    %v1031 = vsel %vm169, %v1028, 0
    %1033 = vmatpush.xpose.msra.mxu0 0.0
    %1034 = vmatpush.xpose.msra.mxu0 0.0
    %1035 = vmatpush.xpose.msra.mxu0 0.0
    %1036 = vmatpush.xpose.msra.mxu0 0.0
    %1037 = vmatpush.xpose.msra.mxu0 0.0
    %1038 = vmatpush.xpose.msra.mxu0 0.0
    %1039 = vmatpush.xpose.msra.mxu0 0.0
    %1040 = vmatpush.xpose.msra.mxu0 0.0
    %1041 = vmatpush.xpose.msra.mxu0 0.0
    %1042 = vmatpush.xpose.msra.mxu0 0.0
    %1043 = vmatpush.xpose.msra.mxu0 0.0
    %1044 = vmatpush.xpose.msra.mxu0 0.0
    %1045 = vmatpush.xpose.msra.mxu0 0.0
    %1046 = vmatpush.xpose.msra.mxu0 0.0
    %1047 = vmatpush.xpose.msra.mxu0 0.0
    %1048 = vmatpush.xpose.msra.mxu0 %v1031
    %1049 = vmatmul.f32.gmra.mxu0 %v1029
    %v1050 = vpop.f32.mrf.mxu0
    %v1051 = vadd.f32 0.0, %v1050
    %1052 = vdwg.mxu0
    %1053 = vrot.lane.b32.xlu0 %v850, 120
    %v1054 = vpop.permute.xlu0 %1053
    %1055 = vrot.lane.b32.xlu0 %v897, 120
    %v1056 = vpop.permute.xlu0 %1055
    %v1057 = vsel %vm169, %v1054, 0
    %v1059 = vsel %vm169, %v1056, 0
    %1061 = vmatpush.xpose.msra.mxu0 0.0
    %1062 = vmatpush.xpose.msra.mxu0 0.0
    %1063 = vmatpush.xpose.msra.mxu0 0.0
    %1064 = vmatpush.xpose.msra.mxu0 0.0
    %1065 = vmatpush.xpose.msra.mxu0 0.0
    %1066 = vmatpush.xpose.msra.mxu0 0.0
    %1067 = vmatpush.xpose.msra.mxu0 0.0
    %1068 = vmatpush.xpose.msra.mxu0 0.0
    %1069 = vmatpush.xpose.msra.mxu0 0.0
    %1070 = vmatpush.xpose.msra.mxu0 0.0
    %1071 = vmatpush.xpose.msra.mxu0 0.0
    %1072 = vmatpush.xpose.msra.mxu0 0.0
    %1073 = vmatpush.xpose.msra.mxu0 0.0
    %1074 = vmatpush.xpose.msra.mxu0 0.0
    %1075 = vmatpush.xpose.msra.mxu0 0.0
    %1076 = vmatpush.xpose.msra.mxu0 %v1059
    %1077 = vmatmul.f32.gmra.mxu0 %v1057
    %v1078 = vpop.f32.mrf.mxu0
    %v1079 = vadd.f32 0.0, %v1078
    %1080 = vdwg.mxu0
    %v1081 = vsel %vm169, %v1051, -inf
    %1082 = vmax.xlane.f32.xlu0 %v1081
    %v1083 = vpop.xlane.xlu0 %1082
    %v1084 = vsel %vm169, %v1079, -inf
    %1085 = vmax.xlane.f32.xlu0 %v1084
    %v1086 = vpop.xlane.xlu0 %1085
    %v1087 = vsub.f32 %v1051, %v1083
    %v1088 = vsub.f32 %v1079, %v1086
    %v1089 = vmul.f32 %v1087, 1.442695
    %v1090 = vpow.pop %v1089
    %v1091 = vmul.f32 %v1088, 1.442695
    %v1092 = vpow.pop %v1091
    %v1093 = vsel %vm169, %v1090, 0.0
    %1094 = vadd.xlane.f32.xlu0 %v1093
    %v1095 = vpop.xlane.xlu0 %1094
    %v1096 = vsel %vm169, %v1092, 0.0
    %1097 = vadd.xlane.f32.xlu0 %v1096
    %v1098 = vpop.xlane.xlu0 %1097
    %v1099 = vrcp.pop %v1095
    %v1100 = vrcp.pop %v1098
    %v1101 = vmul.f32 %v1090, %v1099
    %v1102 = vmul.f32 %v1092, %v1100
    %1103 = vrot.lane.b32.xlu0 %v894, 88
    %v1104 = vpop.permute.xlu0 %1103
    %v1107 = vsel %vm169, %v1101, 0
    %1109 = vmatpush.msra.mxu0 0.0
    %1110 = vmatpush.msra.mxu0 0.0
    %1111 = vmatpush.msra.mxu0 0.0
    %1112 = vmatpush.msra.mxu0 0.0
    %1113 = vmatpush.msra.mxu0 0.0
    %1114 = vmatpush.msra.mxu0 0.0
    %1115 = vmatpush.msra.mxu0 0.0
    %1116 = vmatpush.msra.mxu0 0.0
    %1117 = vmatpush.msra.mxu0 0.0
    %1118 = vmatpush.msra.mxu0 0.0
    %1119 = vmatpush.msra.mxu0 0.0
    %1120 = vmatpush.msra.mxu0 0.0
    %1121 = vmatpush.msra.mxu0 0.0
    %1122 = vmatpush.msra.mxu0 0.0
    %1123 = vmatpush.msra.mxu0 0.0
    %1124 = vmatpush.msra.mxu0 %v1104
    %1125 = vmatmul.f32.gmra.mxu0 %v1107
    %v1126 = vpop.f32.mrf.mxu0
    %v1127 = vadd.f32 0.0, %v1126
    %1128 = vdwg.mxu0
    %1129 = vrot.lane.b32.xlu0 %v897, 88
    %v1130 = vpop.permute.xlu0 %1129
    %v1133 = vsel %vm169, %v1102, 0
    %1135 = vmatpush.msra.mxu0 0.0
    %1136 = vmatpush.msra.mxu0 0.0
    %1137 = vmatpush.msra.mxu0 0.0
    %1138 = vmatpush.msra.mxu0 0.0
    %1139 = vmatpush.msra.mxu0 0.0
    %1140 = vmatpush.msra.mxu0 0.0
    %1141 = vmatpush.msra.mxu0 0.0
    %1142 = vmatpush.msra.mxu0 0.0
    %1143 = vmatpush.msra.mxu0 0.0
    %1144 = vmatpush.msra.mxu0 0.0
    %1145 = vmatpush.msra.mxu0 0.0
    %1146 = vmatpush.msra.mxu0 0.0
    %1147 = vmatpush.msra.mxu0 0.0
    %1148 = vmatpush.msra.mxu0 0.0
    %1149 = vmatpush.msra.mxu0 0.0
    %1150 = vmatpush.msra.mxu0 %v1130
    %1151 = vmatmul.f32.gmra.mxu0 %v1133
    %v1152 = vpop.f32.mrf.mxu0
    %v1153 = vadd.f32 0.0, %v1152
    %1154 = vdwg.mxu0
    %1155 = vrot.lane.b32.xlu0 %v849, 112
    %v1156 = vpop.permute.xlu0 %1155
    %1157 = vrot.lane.b32.xlu0 %v894, 112
    %v1158 = vpop.permute.xlu0 %1157
    %v1159 = vsel %vm169, %v1156, 0
    %v1161 = vsel %vm169, %v1158, 0
    %1163 = vmatpush.xpose.msra.mxu0 0.0
    %1164 = vmatpush.xpose.msra.mxu0 0.0
    %1165 = vmatpush.xpose.msra.mxu0 0.0
    %1166 = vmatpush.xpose.msra.mxu0 0.0
    %1167 = vmatpush.xpose.msra.mxu0 0.0
    %1168 = vmatpush.xpose.msra.mxu0 0.0
    %1169 = vmatpush.xpose.msra.mxu0 0.0
    %1170 = vmatpush.xpose.msra.mxu0 0.0
    %1171 = vmatpush.xpose.msra.mxu0 0.0
    %1172 = vmatpush.xpose.msra.mxu0 0.0
    %1173 = vmatpush.xpose.msra.mxu0 0.0
    %1174 = vmatpush.xpose.msra.mxu0 0.0
    %1175 = vmatpush.xpose.msra.mxu0 0.0
    %1176 = vmatpush.xpose.msra.mxu0 0.0
    %1177 = vmatpush.xpose.msra.mxu0 0.0
    %1178 = vmatpush.xpose.msra.mxu0 %v1161
    %1179 = vmatmul.f32.gmra.mxu0 %v1159
    %v1180 = vpop.f32.mrf.mxu0
    %v1181 = vadd.f32 0.0, %v1180
    %1182 = vdwg.mxu0
    %1183 = vrot.lane.b32.xlu0 %v850, 112
    %v1184 = vpop.permute.xlu0 %1183
    %1185 = vrot.lane.b32.xlu0 %v897, 112
    %v1186 = vpop.permute.xlu0 %1185
    %v1187 = vsel %vm169, %v1184, 0
    %v1189 = vsel %vm169, %v1186, 0
    %1191 = vmatpush.xpose.msra.mxu0 0.0
    %1192 = vmatpush.xpose.msra.mxu0 0.0
    %1193 = vmatpush.xpose.msra.mxu0 0.0
    %1194 = vmatpush.xpose.msra.mxu0 0.0
    %1195 = vmatpush.xpose.msra.mxu0 0.0
    %1196 = vmatpush.xpose.msra.mxu0 0.0
    %1197 = vmatpush.xpose.msra.mxu0 0.0
    %1198 = vmatpush.xpose.msra.mxu0 0.0
    %1199 = vmatpush.xpose.msra.mxu0 0.0
    %1200 = vmatpush.xpose.msra.mxu0 0.0
    %1201 = vmatpush.xpose.msra.mxu0 0.0
    %1202 = vmatpush.xpose.msra.mxu0 0.0
    %1203 = vmatpush.xpose.msra.mxu0 0.0
    %1204 = vmatpush.xpose.msra.mxu0 0.0
    %1205 = vmatpush.xpose.msra.mxu0 0.0
    %1206 = vmatpush.xpose.msra.mxu0 %v1189
    %1207 = vmatmul.f32.gmra.mxu0 %v1187
    %v1208 = vpop.f32.mrf.mxu0
    %v1209 = vadd.f32 0.0, %v1208
    %1210 = vdwg.mxu0
    %v1211 = vsel %vm169, %v1181, -inf
    %1212 = vmax.xlane.f32.xlu0 %v1211
    %v1213 = vpop.xlane.xlu0 %1212
    %v1214 = vsel %vm169, %v1209, -inf
    %1215 = vmax.xlane.f32.xlu0 %v1214
    %v1216 = vpop.xlane.xlu0 %1215
    %v1217 = vsub.f32 %v1181, %v1213
    %v1218 = vsub.f32 %v1209, %v1216
    %v1219 = vmul.f32 %v1217, 1.442695
    %v1220 = vpow.pop %v1219
    %v1221 = vmul.f32 %v1218, 1.442695
    %v1222 = vpow.pop %v1221
    %v1223 = vsel %vm169, %v1220, 0.0
    %1224 = vadd.xlane.f32.xlu0 %v1223
    %v1225 = vpop.xlane.xlu0 %1224
    %v1226 = vsel %vm169, %v1222, 0.0
    %1227 = vadd.xlane.f32.xlu0 %v1226
    %v1228 = vpop.xlane.xlu0 %1227
    %v1229 = vrcp.pop %v1225
    %v1230 = vrcp.pop %v1228
    %v1231 = vmul.f32 %v1220, %v1229
    %v1232 = vmul.f32 %v1222, %v1230
    %1233 = vrot.lane.b32.xlu0 %v894, 80
    %v1234 = vpop.permute.xlu0 %1233
    %v1237 = vsel %vm169, %v1231, 0
    %1239 = vmatpush.msra.mxu0 0.0
    %1240 = vmatpush.msra.mxu0 0.0
    %1241 = vmatpush.msra.mxu0 0.0
    %1242 = vmatpush.msra.mxu0 0.0
    %1243 = vmatpush.msra.mxu0 0.0
    %1244 = vmatpush.msra.mxu0 0.0
    %1245 = vmatpush.msra.mxu0 0.0
    %1246 = vmatpush.msra.mxu0 0.0
    %1247 = vmatpush.msra.mxu0 0.0
    %1248 = vmatpush.msra.mxu0 0.0
    %1249 = vmatpush.msra.mxu0 0.0
    %1250 = vmatpush.msra.mxu0 0.0
    %1251 = vmatpush.msra.mxu0 0.0
    %1252 = vmatpush.msra.mxu0 0.0
    %1253 = vmatpush.msra.mxu0 0.0
    %1254 = vmatpush.msra.mxu0 %v1234
    %1255 = vmatmul.f32.gmra.mxu0 %v1237
    %v1256 = vpop.f32.mrf.mxu0
    %v1257 = vadd.f32 0.0, %v1256
    %1258 = vdwg.mxu0
    %1259 = vrot.lane.b32.xlu0 %v897, 80
    %v1260 = vpop.permute.xlu0 %1259
    %v1263 = vsel %vm169, %v1232, 0
    %1265 = vmatpush.msra.mxu0 0.0
    %1266 = vmatpush.msra.mxu0 0.0
    %1267 = vmatpush.msra.mxu0 0.0
    %1268 = vmatpush.msra.mxu0 0.0
    %1269 = vmatpush.msra.mxu0 0.0
    %1270 = vmatpush.msra.mxu0 0.0
    %1271 = vmatpush.msra.mxu0 0.0
    %1272 = vmatpush.msra.mxu0 0.0
    %1273 = vmatpush.msra.mxu0 0.0
    %1274 = vmatpush.msra.mxu0 0.0
    %1275 = vmatpush.msra.mxu0 0.0
    %1276 = vmatpush.msra.mxu0 0.0
    %1277 = vmatpush.msra.mxu0 0.0
    %1278 = vmatpush.msra.mxu0 0.0
    %1279 = vmatpush.msra.mxu0 0.0
    %1280 = vmatpush.msra.mxu0 %v1260
    %1281 = vmatmul.f32.gmra.mxu0 %v1263
    %v1282 = vpop.f32.mrf.mxu0
    %v1283 = vadd.f32 0.0, %v1282
    %1284 = vdwg.mxu0
    %1285 = vrot.lane.b32.xlu0 %v849, 104
    %v1286 = vpop.permute.xlu0 %1285
    %1287 = vrot.lane.b32.xlu0 %v894, 104
    %v1288 = vpop.permute.xlu0 %1287
    %v1289 = vsel %vm169, %v1286, 0
    %v1291 = vsel %vm169, %v1288, 0
    %1293 = vmatpush.xpose.msra.mxu0 0.0
    %1294 = vmatpush.xpose.msra.mxu0 0.0
    %1295 = vmatpush.xpose.msra.mxu0 0.0
    %1296 = vmatpush.xpose.msra.mxu0 0.0
    %1297 = vmatpush.xpose.msra.mxu0 0.0
    %1298 = vmatpush.xpose.msra.mxu0 0.0
    %1299 = vmatpush.xpose.msra.mxu0 0.0
    %1300 = vmatpush.xpose.msra.mxu0 0.0
    %1301 = vmatpush.xpose.msra.mxu0 0.0
    %1302 = vmatpush.xpose.msra.mxu0 0.0
    %1303 = vmatpush.xpose.msra.mxu0 0.0
    %1304 = vmatpush.xpose.msra.mxu0 0.0
    %1305 = vmatpush.xpose.msra.mxu0 0.0
    %1306 = vmatpush.xpose.msra.mxu0 0.0
    %1307 = vmatpush.xpose.msra.mxu0 0.0
    %1308 = vmatpush.xpose.msra.mxu0 %v1291
    %1309 = vmatmul.f32.gmra.mxu0 %v1289
    %v1310 = vpop.f32.mrf.mxu0
    %v1311 = vadd.f32 0.0, %v1310
    %1312 = vdwg.mxu0
    %1313 = vrot.lane.b32.xlu0 %v850, 104
    %v1314 = vpop.permute.xlu0 %1313
    %1315 = vrot.lane.b32.xlu0 %v897, 104
    %v1316 = vpop.permute.xlu0 %1315
    %v1317 = vsel %vm169, %v1314, 0
    %v1319 = vsel %vm169, %v1316, 0
    %1321 = vmatpush.xpose.msra.mxu0 0.0
    %1322 = vmatpush.xpose.msra.mxu0 0.0
    %1323 = vmatpush.xpose.msra.mxu0 0.0
    %1324 = vmatpush.xpose.msra.mxu0 0.0
    %1325 = vmatpush.xpose.msra.mxu0 0.0
    %1326 = vmatpush.xpose.msra.mxu0 0.0
    %1327 = vmatpush.xpose.msra.mxu0 0.0
    %1328 = vmatpush.xpose.msra.mxu0 0.0
    %1329 = vmatpush.xpose.msra.mxu0 0.0
    %1330 = vmatpush.xpose.msra.mxu0 0.0
    %1331 = vmatpush.xpose.msra.mxu0 0.0
    %1332 = vmatpush.xpose.msra.mxu0 0.0
    %1333 = vmatpush.xpose.msra.mxu0 0.0
    %1334 = vmatpush.xpose.msra.mxu0 0.0
    %1335 = vmatpush.xpose.msra.mxu0 0.0
    %1336 = vmatpush.xpose.msra.mxu0 %v1319
    %1337 = vmatmul.f32.gmra.mxu0 %v1317
    %v1338 = vpop.f32.mrf.mxu0
    %v1339 = vadd.f32 0.0, %v1338
    %1340 = vdwg.mxu0
    %v1341 = vsel %vm169, %v1311, -inf
    %1342 = vmax.xlane.f32.xlu0 %v1341
    %v1343 = vpop.xlane.xlu0 %1342
    %v1344 = vsel %vm169, %v1339, -inf
    %1345 = vmax.xlane.f32.xlu0 %v1344
    %v1346 = vpop.xlane.xlu0 %1345
    %v1347 = vsub.f32 %v1311, %v1343
    %v1348 = vsub.f32 %v1339, %v1346
    %v1349 = vmul.f32 %v1347, 1.442695
    %v1350 = vpow.pop %v1349
    %v1351 = vmul.f32 %v1348, 1.442695
    %v1352 = vpow.pop %v1351
    %v1353 = vsel %vm169, %v1350, 0.0
    %1354 = vadd.xlane.f32.xlu0 %v1353
    %v1355 = vpop.xlane.xlu0 %1354
    %v1356 = vsel %vm169, %v1352, 0.0
    %1357 = vadd.xlane.f32.xlu0 %v1356
    %v1358 = vpop.xlane.xlu0 %1357
    %v1359 = vrcp.pop %v1355
    %v1360 = vrcp.pop %v1358
    %v1361 = vmul.f32 %v1350, %v1359
    %v1362 = vmul.f32 %v1352, %v1360
    %1363 = vrot.lane.b32.xlu0 %v894, 72
    %v1364 = vpop.permute.xlu0 %1363
    %v1367 = vsel %vm169, %v1361, 0
    %1369 = vmatpush.msra.mxu0 0.0
    %1370 = vmatpush.msra.mxu0 0.0
    %1371 = vmatpush.msra.mxu0 0.0
    %1372 = vmatpush.msra.mxu0 0.0
    %1373 = vmatpush.msra.mxu0 0.0
    %1374 = vmatpush.msra.mxu0 0.0
    %1375 = vmatpush.msra.mxu0 0.0
    %1376 = vmatpush.msra.mxu0 0.0
    %1377 = vmatpush.msra.mxu0 0.0
    %1378 = vmatpush.msra.mxu0 0.0
    %1379 = vmatpush.msra.mxu0 0.0
    %1380 = vmatpush.msra.mxu0 0.0
    %1381 = vmatpush.msra.mxu0 0.0
    %1382 = vmatpush.msra.mxu0 0.0
    %1383 = vmatpush.msra.mxu0 0.0
    %1384 = vmatpush.msra.mxu0 %v1364
    %1385 = vmatmul.f32.gmra.mxu0 %v1367
    %v1386 = vpop.f32.mrf.mxu0
    %v1387 = vadd.f32 0.0, %v1386
    %1388 = vdwg.mxu0
    %1389 = vrot.lane.b32.xlu0 %v897, 72
    %v1390 = vpop.permute.xlu0 %1389
    %v1393 = vsel %vm169, %v1362, 0
    %1395 = vmatpush.msra.mxu0 0.0
    %1396 = vmatpush.msra.mxu0 0.0
    %1397 = vmatpush.msra.mxu0 0.0
    %1398 = vmatpush.msra.mxu0 0.0
    %1399 = vmatpush.msra.mxu0 0.0
    %1400 = vmatpush.msra.mxu0 0.0
    %1401 = vmatpush.msra.mxu0 0.0
    %1402 = vmatpush.msra.mxu0 0.0
    %1403 = vmatpush.msra.mxu0 0.0
    %1404 = vmatpush.msra.mxu0 0.0
    %1405 = vmatpush.msra.mxu0 0.0
    %1406 = vmatpush.msra.mxu0 0.0
    %1407 = vmatpush.msra.mxu0 0.0
    %1408 = vmatpush.msra.mxu0 0.0
    %1409 = vmatpush.msra.mxu0 0.0
    %1410 = vmatpush.msra.mxu0 %v1390
    %1411 = vmatmul.f32.gmra.mxu0 %v1393
    %v1412 = vpop.f32.mrf.mxu0
    %v1413 = vadd.f32 0.0, %v1412
    %1414 = vdwg.mxu0
    %1417 = vrot.lane.b32.xlu0 %v1127, 8
    %v1418 = vpop.permute.xlu0 %1417
    %1419 = vrot.lane.b32.xlu0 %v1153, 8
    %v1420 = vpop.permute.xlu0 %1419
    %1425 = vrot.lane.b32.xlu0 %v1257, 16
    %v1426 = vpop.permute.xlu0 %1425
    %1427 = vrot.lane.b32.xlu0 %v1283, 16
    %v1428 = vpop.permute.xlu0 %1427
    %1433 = vrot.lane.b32.xlu0 %v1387, 24
    %v1434 = vpop.permute.xlu0 %1433
    %1435 = vrot.lane.b32.xlu0 %v1413, 24
    %v1436 = vpop.permute.xlu0 %1435
    %v1439 = vsel %vm169, %v997, %v1418
    %v1440 = vsel %vm169, %v1023, %v1420
    %v1441 = vsel %vm713, %v1439, %v1426
    %v1442 = vsel %vm713, %v1440, %v1428
    %v1443 = vsel %vm716, %v1441, %v1434
    %v1444 = vsel %vm716, %v1442, %v1436
    %v1445 = vld [vmem:[#allocation7] sm:$0xff]
    %v1446 = vld [vmem:[#allocation7 + $0x8] sm:$0xff]
    %v1447 = vld [vmem:[#allocation7 + $0x10] sm:$0xff]
    %v1448 = vld [vmem:[#allocation7 + $0x18] sm:$0xff]
    %v1449 = vperm.slane %v124, 1
    %v1451 = vsel %vm134, %v1443, 0
    %v1454 = vsel %vm134, %v1444, 0
    %1456 = vmatpush.msra.mxu0 0.0
    %1457 = vmatpush.msra.mxu0 0.0
    %1458 = vmatpush.msra.mxu0 0.0
    %1459 = vmatpush.msra.mxu0 0.0
    %1460 = vmatpush.msra.mxu0 0.0
    %1461 = vmatpush.msra.mxu0 0.0
    %1462 = vmatpush.msra.mxu0 0.0
    %1463 = vmatpush.msra.mxu0 0.0
    %1464 = vmatpush.msra.mxu0 0.0
    %1465 = vmatpush.msra.mxu0 0.0
    %1466 = vmatpush.msra.mxu0 0.0
    %1467 = vmatpush.msra.mxu0 0.0
    %1468 = vmatpush.msra.mxu0 %v1448
    %1469 = vmatpush.msra.mxu0 %v1447
    %1470 = vmatpush.msra.mxu0 %v1446
    %1471 = vmatpush.msra.mxu0 %v1445
    %1472 = vmatmul.f32.gmra.mxu0 %v1451
    %v1473 = vpop.f32.mrf.mxu0
    %v1474 = vadd.f32 %v1449, %v1473
    %1475 = vmatmul.f32.gmra.mxu0 %v1454
    %v1476 = vpop.f32.mrf.mxu0
    %v1477 = vadd.f32 %v1449, %v1476
    %1478 = vdwg.mxu0
    %v1479 = vadd.f32 %v810, %v1474
    %v1480 = vadd.f32 %v811, %v1477
    %v1481 = vsel %vm134, %v1479, 0.0
    %1482 = vadd.xlane.f32.xlu0 %v1481
    %v1483 = vpop.xlane.xlu0 %1482
    %v1484 = vsel %vm134, %v1480, 0.0
    %1485 = vadd.xlane.f32.xlu0 %v1484
    %v1486 = vpop.xlane.xlu0 %1485
    %v1487 = vmul.f32 %v1483, %v767
    %v1488 = vmul.f32 %v1486, %v767
    %v1489 = vsub.f32 %v1479, %v1487
    %v1490 = vsub.f32 %v1480, %v1488
    %v1491 = vmul.f32 %v1489, %v1489
    %v1492 = vmul.f32 %v1490, %v1490
    %v1493 = vsel %vm134, %v1491, 0.0
    %1494 = vadd.xlane.f32.xlu0 %v1493
    %v1495 = vpop.xlane.xlu0 %1494
    %v1496 = vsel %vm134, %v1492, 0.0
    %1497 = vadd.xlane.f32.xlu0 %v1496
    %v1498 = vpop.xlane.xlu0 %1497
    %v1499 = vmul.f32 %v1495, %v767
    %v1500 = vmul.f32 %v1498, %v767
    %v1501 = vadd.f32 %v1499, 1e-05
    %v1502 = vadd.f32 %v1500, 1e-05
    %v1503 = vrsqrt.pop %v1501
    %v1504 = vmul.f32 %v1503, %v1501
    %v1505 = vmul.f32 %v1504, %v1503
    %v1506 = vmul.f32 0.5, %v1505
    %v1507 = vsub.f32 1.5, %v1506
    %v1508 = vmul.f32 %v1503, %v1507
    %vm1509 = vweird.f32 %v1501
    %vm1510 = vweird.f32 %v1503
    %vm1511 = vmor %vm1509, %vm1510
    %v1512 = vsel %vm1511, %v1503, %v1508
    %v1513 = vrsqrt.pop %v1502
    %v1514 = vmul.f32 %v1513, %v1502
    %v1515 = vmul.f32 %v1514, %v1513
    %v1516 = vmul.f32 0.5, %v1515
    %v1517 = vsub.f32 1.5, %v1516
    %v1518 = vmul.f32 %v1513, %v1517
    %vm1519 = vweird.f32 %v1502
    %vm1520 = vweird.f32 %v1513
    %vm1521 = vmor %vm1519, %vm1520
    %v1522 = vsel %vm1521, %v1513, %v1518
    %v1523 = vmul.f32 %v1489, %v1512
    %v1524 = vmul.f32 %v1490, %v1522
    %v1525 = vperm.slane %v124, 5
    %v1526 = vmul.f32 %v1523, %v1525
    %v1527 = vmul.f32 %v1524, %v1525
    %v1528 = vperm.slane %v124, 6
    %v1529 = vadd.f32 %v1526, %v1528
    %v1530 = vadd.f32 %v1527, %v1528
    %v1531 = vld [vmem:[#allocation8] sm:$0xff]
    %v1532 = vld [vmem:[#allocation8 + $0x8] sm:$0xff]
    %v1533 = vld [vmem:[#allocation8 + $0x10] sm:$0xff]
    %v1534 = vld [vmem:[#allocation8 + $0x18] sm:$0xff]
    %v1535 = vld [vmem:[%s9] sm:$0x1]
    %v1537 = vperm.slane %v1535, 0
    %v1540 = vsel %vm134, %v1529, 0
    %v1543 = vsel %vm134, %v1530, 0
    %1545 = vmatpush.msra.mxu0 0.0
    %1546 = vmatpush.msra.mxu0 0.0
    %1547 = vmatpush.msra.mxu0 0.0
    %1548 = vmatpush.msra.mxu0 0.0
    %1549 = vmatpush.msra.mxu0 0.0
    %1550 = vmatpush.msra.mxu0 0.0
    %1551 = vmatpush.msra.mxu0 0.0
    %1552 = vmatpush.msra.mxu0 0.0
    %1553 = vmatpush.msra.mxu0 0.0
    %1554 = vmatpush.msra.mxu0 0.0
    %1555 = vmatpush.msra.mxu0 0.0
    %1556 = vmatpush.msra.mxu0 0.0
    %1557 = vmatpush.msra.mxu0 %v1534
    %1558 = vmatpush.msra.mxu0 %v1533
    %1559 = vmatpush.msra.mxu0 %v1532
    %1560 = vmatpush.msra.mxu0 %v1531
    %1561 = vmatmul.f32.gmra.mxu0 %v1540
    %v1562 = vpop.f32.mrf.mxu0
    %v1563 = vadd.f32 %v1537, %v1562
    %1564 = vmatmul.f32.gmra.mxu0 %v1543
    %v1565 = vpop.f32.mrf.mxu0
    %v1566 = vadd.f32 %v1537, %v1565
    %1567 = vdwg.mxu0
    %v1568 = vmax.f32 %v1563, 0.0
    %v1569 = vmax.f32 %v1566, 0.0
    %v1570 = vld [vmem:[%s10] sm:$0xff]
    %v1571 = vld [vmem:[%s10 + $0x8] sm:$0xff]
    %v1572 = vld [vmem:[%s10 + $0x10] sm:$0xff]
    %v1573 = vld [vmem:[%s10 + $0x18] sm:$0xff]
    %v1574 = vld [vmem:[%s10 + $0x20] sm:$0xff]
    %v1575 = vld [vmem:[%s10 + $0x28] sm:$0xff]
    %v1576 = vld [vmem:[%s10 + $0x30] sm:$0xff]
    %v1577 = vld [vmem:[%s10 + $0x38] sm:$0xff]
    %v1578 = vperm.slane %v124, 2
    %vm1579 = vcmask 523264
    %v1581 = vsel %vm1579, %v1568, 0
    %v1584 = vsel %vm1579, %v1569, 0
    %1586 = vmatpush.msra.mxu0 0.0
    %1587 = vmatpush.msra.mxu0 0.0
    %1588 = vmatpush.msra.mxu0 0.0
    %1589 = vmatpush.msra.mxu0 0.0
    %1590 = vmatpush.msra.mxu0 0.0
    %1591 = vmatpush.msra.mxu0 0.0
    %1592 = vmatpush.msra.mxu0 0.0
    %1593 = vmatpush.msra.mxu0 0.0
    %1594 = vmatpush.msra.mxu0 %v1577
    %1595 = vmatpush.msra.mxu0 %v1576
    %1596 = vmatpush.msra.mxu0 %v1575
    %1597 = vmatpush.msra.mxu0 %v1574
    %1598 = vmatpush.msra.mxu0 %v1573
    %1599 = vmatpush.msra.mxu0 %v1572
    %1600 = vmatpush.msra.mxu0 %v1571
    %1601 = vmatpush.msra.mxu0 %v1570
    %1602 = vmatmul.f32.gmra.mxu0 %v1581
    %v1603 = vpop.f32.mrf.mxu0
    %v1604 = vadd.f32 %v1578, %v1603
    %1605 = vmatmul.f32.gmra.mxu0 %v1584
    %v1606 = vpop.f32.mrf.mxu0
    %v1607 = vadd.f32 %v1578, %v1606
    %1608 = vdwg.mxu0
    %v1609 = vadd.f32 %v1529, %v1604
    %v1610 = vadd.f32 %v1530, %v1607
    %v1611 = vsel %vm134, %v1609, 0.0
    %1612 = vadd.xlane.f32.xlu0 %v1611
    %v1613 = vpop.xlane.xlu0 %1612
    %v1614 = vsel %vm134, %v1610, 0.0
    %1615 = vadd.xlane.f32.xlu0 %v1614
    %v1616 = vpop.xlane.xlu0 %1615
    %v1617 = vmul.f32 %v1613, %v767
    %v1618 = vmul.f32 %v1616, %v767
    %v1619 = vsub.f32 %v1609, %v1617
    %v1620 = vsub.f32 %v1610, %v1618
    %v1621 = vmul.f32 %v1619, %v1619
    %v1622 = vmul.f32 %v1620, %v1620
    %v1623 = vsel %vm134, %v1621, 0.0
    %1624 = vadd.xlane.f32.xlu0 %v1623
    %v1625 = vpop.xlane.xlu0 %1624
    %v1626 = vsel %vm134, %v1622, 0.0
    %1627 = vadd.xlane.f32.xlu0 %v1626
    %v1628 = vpop.xlane.xlu0 %1627
    %v1629 = vmul.f32 %v1625, %v767
    %v1630 = vmul.f32 %v1628, %v767
    %v1631 = vadd.f32 %v1629, 1e-05
    %v1632 = vadd.f32 %v1630, 1e-05
    %v1633 = vrsqrt.pop %v1631
    %v1634 = vmul.f32 %v1633, %v1631
    %v1635 = vmul.f32 %v1634, %v1633
    %v1636 = vmul.f32 0.5, %v1635
    %v1637 = vsub.f32 1.5, %v1636
    %v1638 = vmul.f32 %v1633, %v1637
    %vm1639 = vweird.f32 %v1631
    %vm1640 = vweird.f32 %v1633
    %vm1641 = vmor %vm1639, %vm1640
    %v1642 = vsel %vm1641, %v1633, %v1638
    %v1643 = vrsqrt.pop %v1632
    %v1644 = vmul.f32 %v1643, %v1632
    %v1645 = vmul.f32 %v1644, %v1643
    %v1646 = vmul.f32 0.5, %v1645
    %v1647 = vsub.f32 1.5, %v1646
    %v1648 = vmul.f32 %v1643, %v1647
    %vm1649 = vweird.f32 %v1632
    %vm1650 = vweird.f32 %v1643
    %vm1651 = vmor %vm1649, %vm1650
    %v1652 = vsel %vm1651, %v1643, %v1648
    %v1653 = vmul.f32 %v1619, %v1642
    %v1654 = vmul.f32 %v1620, %v1652
    %v1655 = vperm.slane %v124, 7
    %v1656 = vmul.f32 %v1653, %v1655
    %v1657 = vmul.f32 %v1654, %v1655
    %v1658 = vperm.slane %v125, 0
    %v1659 = vadd.f32 %v1656, %v1658
    %v1660 = vadd.f32 %v1657, %v1658
    %1661 = vst.msk [vmem:[#allocation11] sm:$0xff] %vm134, %v1659
    %1662 = vst.msk [vmem:[#allocation11 + $0x8] sm:$0xff] %vm134, %v1660
    // Predicated region
    $region70: #{tpu_custom_call.1} parent=1 // pred_check
      _
    $region71: #{tpu_custom_call.1} parent=1 // pred_check_branch
      %1664 = sbr.rel (0) target = $region73
    $region72: #{tpu_custom_call.1} parent=1 // pred_region
      %1666 = vsyncadd [#allocation4], 0
      %s1667 = sshll.u32 [#allocation11], 4
      %s1668 = int_to_ptr.vmem [resolvable:$true] %s1667
      %s1669 = sshll.u32 %s12, 4
      %s1670 = int_to_ptr.hbm [resolvable:$true] %s1669
      %1675 = dma.vmem_to_hbm [thread:$0]  %s1668, 256, %s1670, [#allocation4], 128, 128, 8
    $region73: #{tpu_custom_call.1} parent=1 // pred_fallthru
      _
    // Predicated region
    $region74: #{tpu_custom_call.1} parent=1 // pred_check
      _
    $region75: #{tpu_custom_call.1} parent=1 // pred_check_branch
      %1677 = sbr.rel (0) target = $region77
    $region76: #{tpu_custom_call.1} parent=1 // pred_region
      %1679 = dma.done [#allocation4], 256
    $region77: #{tpu_custom_call.1} parent=1 // pred_fallthru
      _
    %1680 = vsyncpa [#allocation3], 1
    %1681 = vsyncpa [#allocation6], 1
    %1682 = vsyncpa [#allocation9], 1
    %1683 = vsyncpa [#allocation4], 1

</llo_original>
